<compile_context>
chip_gen: v7x
topology: tpu7x:2x2x1
jax: 0.10.0
libtpu: 0.0.40
codegen_flags: <defaults>
</compile_context>

<pallas_src>
import functools

import jax
import jax.numpy as jnp
from jax.experimental import pallas as pl
from jax.experimental.pallas import tpu as pltpu


# ----------------------------------------------------------------------------
# Fused LSTM + MDN kernel (single invocation, in-kernel time loop)
# ----------------------------------------------------------------------------
def mdn_rnn_kernel(B, T, H, K, O,
                   x_ref, h0_ref, c0_ref, wih_ref, whh_ref, b_ref,
                   wfc_ref, bfc_ref, whead_ref, bhead_ref,
                   out_ref, hN_ref, cN_ref,
                   gx_sc, ys_sc):
    KO = K * O

    # ---- hoisted input projection: one matmul over all B*T rows -------------
    # x rows are batch-major: row index = b*T + t.
    gx_sc[...] = (jnp.dot(x_ref[...], wih_ref[...],
                          preferred_element_type=jnp.float32) + b_ref[...])

    whh = whh_ref[...]  # loop-invariant, load once

    # ---- recurrent loop over time -------------------------------------------
    def step(t, carry):
        h, c = carry
        # Gather this timestep's precomputed x-projection rows (one per batch).
        g_rows = [gx_sc[pl.ds(b * T + t, 1), :] for b in range(B)]
        g_x = g_rows[0] if B == 1 else jnp.concatenate(g_rows, axis=0)  # (B,4H)

        gates = g_x + jnp.dot(h, whh, preferred_element_type=jnp.float32)

        # Two full-width transcendental passes, then slice (gate order i,f,g,o)
        sg = jax.nn.sigmoid(gates)
        tg = jnp.tanh(gates)
        i = sg[:, 0 * H:1 * H]
        f = sg[:, 1 * H:2 * H]
        g = tg[:, 2 * H:3 * H]
        o = sg[:, 3 * H:4 * H]

        c_new = f * c + i * g
        h_new = o * jnp.tanh(c_new)

        # Hidden states stored time-major: rows [t*B, (t+1)*B)
        ys_sc[pl.ds(t * B, B), :] = h_new
        return h_new, c_new

    h0 = h0_ref[...]
    c0 = c0_ref[...]
    h_n, c_n = jax.lax.fori_loop(0, T, step, (h0, c0), unroll=True)

    # Final LSTM state written exactly once.
    hN_ref[...] = h_n
    cN_ref[...] = c_n

    # ---- fused MDN head over all timesteps -----------------------------------
    y = ys_sc[...]                                                   # (T*B, H)
    hm = jnp.tanh(jnp.dot(y, wfc_ref[...],
                          preferred_element_type=jnp.float32) + bfc_ref[...])
    raw = (jnp.dot(hm, whead_ref[...],
                   preferred_element_type=jnp.float32) + bhead_ref[...])
    # raw columns: [pi_logits | sigma_logits | mu], each block K*O wide,
    # mixture-major inside a block (col = k*O + o).

    pi_logits = raw[:, 0:KO]
    # Numerically stable softmax over the mixture axis (static chunk loop).
    m = pi_logits[:, 0:O]
    for k in range(1, K):
        m = jnp.maximum(m, pi_logits[:, k * O:(k + 1) * O])
    e = jnp.exp(pi_logits - jnp.tile(m, (1, K)))
    s = e[:, 0:O]
    for k in range(1, K):
        s = s + e[:, k * O:(k + 1) * O]
    pi = e / jnp.tile(s, (1, K))

    sigma = jnp.exp(raw[:, KO:2 * KO])
    mu = raw[:, 2 * KO:3 * KO]

    # Single lane-dense output slab: [pi | sigma | mu]
    out_ref[...] = jnp.concatenate([pi, sigma, mu], axis=1)


# ----------------------------------------------------------------------------
# Parameter init (deterministic, PyTorch-style uniform ranges)
# ----------------------------------------------------------------------------
def init_params(key, input_size, output_size, mdn_units, hidden_size, num_mixs):
    H, U, KO = hidden_size, mdn_units, num_mixs * output_size
    ks = jax.random.split(key, 12)

    def u(k, shape, scale):
        return jax.random.uniform(k, shape, jnp.float32, -scale, scale)

    s_lstm = 1.0 / float(H) ** 0.5
    s_fc = 1.0 / float(H) ** 0.5
    s_head = 1.0 / float(U) ** 0.5
    return {
        "w_ih": u(ks[0], (4 * H, input_size), s_lstm),
        "w_hh": u(ks[1], (4 * H, H), s_lstm),
        "b_ih": u(ks[2], (4 * H,), s_lstm),
        "b_hh": u(ks[3], (4 * H,), s_lstm),
        "w_fc": u(ks[4], (U, H), s_fc),
        "b_fc": u(ks[5], (U,), s_fc),
        "w_pi": u(ks[6], (KO, U), s_head),
        "b_pi": u(ks[7], (KO,), s_head),
        "w_sig": u(ks[8], (KO, U), s_head),
        "b_sig": u(ks[9], (KO,), s_head),
        "w_mu": u(ks[10], (KO, U), s_head),
        "b_mu": u(ks[11], (KO,), s_head),
    }


# ----------------------------------------------------------------------------
# Forward pass (== MDN_RNN.forward): returns (pi, sigma, mu, (h_n, c_n))
# ----------------------------------------------------------------------------
def mdn_rnn_forward(params, x, state=None, *, hidden_size, output_size,
                    mdn_units, num_mixs):
    B, T, In = x.shape
    H, K, O = hidden_size, num_mixs, output_size
    KO = K * O

    if state is None:
        h0 = jnp.zeros((B, H), jnp.float32)
        c0 = jnp.zeros((B, H), jnp.float32)
    else:
        h0 = state[0].reshape(B, H).astype(jnp.float32)
        c0 = state[1].reshape(B, H).astype(jnp.float32)

    # Free row-major view (row = b*T + t); no transpose/relayout of x.
    x2d = x.reshape(B * T, In).astype(jnp.float32)

    # Weight prep (one-time, on parameters): transpose to (in, out) and fuse
    # the three head weights into a single (U, 3*K*O) matrix.
    wih = params["w_ih"].T                                  # (In, 4H)
    whh = params["w_hh"].T                                  # (H, 4H)
    b = (params["b_ih"] + params["b_hh"])[None, :]          # (1, 4H)
    wfc = params["w_fc"].T                                  # (H, U)
    bfc = params["b_fc"][None, :]                           # (1, U)
    whead = jnp.concatenate(
        [params["w_pi"].T, params["w_sig"].T, params["w_mu"].T], axis=1)   # (U, 3KO)
    bhead = jnp.concatenate(
        [params["b_pi"], params["b_sig"], params["b_mu"]])[None, :]        # (1, 3KO)

    out, h_n, c_n = pl.pallas_call(
        functools.partial(mdn_rnn_kernel, B, T, H, K, O),
        out_shape=(
            jax.ShapeDtypeStruct((T * B, 3 * KO), jnp.float32),   # [pi|sigma|mu]
            jax.ShapeDtypeStruct((B, H), jnp.float32),            # h_n
            jax.ShapeDtypeStruct((B, H), jnp.float32),            # c_n
        ),
        scratch_shapes=[
            pltpu.VMEM((B * T, 4 * H), jnp.float32),   # hoisted x-projection
            pltpu.VMEM((T * B, H), jnp.float32),       # per-step hidden states
        ],
    )(x2d, h0, c0, wih, whh, b, wfc, bfc, whead, bhead)

    # out rows are time-major (t*B + b); cols are [head, k, o] head-major.
    out5 = jnp.transpose(out.reshape(T, B, 3, K, O), (1, 0, 2, 3, 4))  # (B,T,3,K,O)
    pi = out5[:, :, 0]
    sigma = out5[:, :, 1]
    mu = out5[:, :, 2]
    state_out = (h_n[None, ...], c_n[None, ...])               # (1, B, H) each
    return pi, sigma, mu, state_out


if __name__ == "__main__":
    B, T = 2, 8
    input_size, output_size = 16, 4
    hidden_size, mdn_units, num_mixs = 32, 64, 5

    key = jax.random.PRNGKey(0)
    pkey, xkey = jax.random.split(key)
    params = init_params(pkey, input_size, output_size, mdn_units,
                         hidden_size, num_mixs)
    x = jax.random.normal(xkey, (B, T, input_size), jnp.float32)

    pi, sigma, mu, state = mdn_rnn_forward(
        params, x, None,
        hidden_size=hidden_size, output_size=output_size,
        mdn_units=mdn_units, num_mixs=num_mixs)
    jax.block_until_ready((pi, sigma, mu, state))

    assert pi.shape == (B, T, num_mixs, output_size)
    assert sigma.shape == (B, T, num_mixs, output_size)
    assert mu.shape == (B, T, num_mixs, output_size)
    assert state[0].shape == (1, B, hidden_size)
    assert state[1].shape == (1, B, hidden_size)
    # pi is a softmax over the mixture axis -> sums to 1
    assert bool(jnp.allclose(jnp.sum(pi, axis=2), 1.0, atol=1e-4))
    assert bool(jnp.all(sigma > 0.0))
    print("KERNEL_OK")
</pallas_src>

<mosaic_0001>
module attributes {stable_mosaic.version = 11 : i64} {
  func.func @mdn_rnn_kernel(%arg0: memref<16x16xf32, #tpu.memory_space<vmem>>, %arg1: memref<2x32xf32, #tpu.memory_space<vmem>>, %arg2: memref<2x32xf32, #tpu.memory_space<vmem>>, %arg3: memref<16x128xf32, #tpu.memory_space<vmem>>, %arg4: memref<32x128xf32, #tpu.memory_space<vmem>>, %arg5: memref<1x128xf32, #tpu.memory_space<vmem>>, %arg6: memref<32x64xf32, #tpu.memory_space<vmem>>, %arg7: memref<1x64xf32, #tpu.memory_space<vmem>>, %arg8: memref<64x60xf32, #tpu.memory_space<vmem>>, %arg9: memref<1x60xf32, #tpu.memory_space<vmem>>, %arg10: memref<16x60xf32, #tpu.memory_space<vmem>>, %arg11: memref<2x32xf32, #tpu.memory_space<vmem>>, %arg12: memref<2x32xf32, #tpu.memory_space<vmem>>, %arg13: memref<16x128xf32, #tpu.memory_space<vmem>>, %arg14: memref<16x32xf32, #tpu.memory_space<vmem>>) attributes {dimension_semantics = [], scalar_prefetch = 0 : i64, scratch_operands = 2 : i64, tpu.core_type = #tpu.core_type<tc>} {
    %c0 = arith.constant 0 : index
    %c0_0 = arith.constant 0 : index
    %0 = vector.load %arg0[%c0, %c0_0] : memref<16x16xf32, #tpu.memory_space<vmem>>, vector<16x16xf32>
    %c0_1 = arith.constant 0 : index
    %c0_2 = arith.constant 0 : index
    %1 = vector.load %arg3[%c0_1, %c0_2] : memref<16x128xf32, #tpu.memory_space<vmem>>, vector<16x128xf32>
    %cst = arith.constant dense<0.000000e+00> : vector<16x128xf32>
    %2 = tpu.matmul %0, %1, %cst {dimension_numbers = #tpu.dot_dimension_numbers<[1], [0], [0], [1], [0, 0, 1, 1], [], []>} : vector<16x16xf32>, vector<16x128xf32>, vector<16x128xf32> -> vector<16x128xf32>
    %c0_3 = arith.constant 0 : index
    %c0_4 = arith.constant 0 : index
    %3 = vector.load %arg5[%c0_3, %c0_4] : memref<1x128xf32, #tpu.memory_space<vmem>>, vector<1x128xf32>
    %4 = vector.broadcast %3 : vector<1x128xf32> to vector<16x128xf32>
    %5 = arith.addf %2, %4 : vector<16x128xf32>
    %c0_5 = arith.constant 0 : index
    %c0_6 = arith.constant 0 : index
    %6 = vector.load %arg13[%c0_5, %c0_6] : memref<16x128xf32, #tpu.memory_space<vmem>>, vector<16x128xf32>
    tpu.vector_store %arg13[%c0_5, %c0_6], %5 {strides = array<i32>} : memref<16x128xf32, #tpu.memory_space<vmem>>, vector<16x128xf32>,
    %c0_7 = arith.constant 0 : index
    %c0_8 = arith.constant 0 : index
    %7 = vector.load %arg4[%c0_7, %c0_8] : memref<32x128xf32, #tpu.memory_space<vmem>>, vector<32x128xf32>
    %c0_9 = arith.constant 0 : index
    %c0_10 = arith.constant 0 : index
    %8 = vector.load %arg1[%c0_9, %c0_10] : memref<2x32xf32, #tpu.memory_space<vmem>>, vector<2x32xf32>
    %c0_11 = arith.constant 0 : index
    %c0_12 = arith.constant 0 : index
    %9 = vector.load %arg2[%c0_11, %c0_12] : memref<2x32xf32, #tpu.memory_space<vmem>>, vector<2x32xf32>
    %c0_i32 = arith.constant 0 : i32
    %c0_i32_13 = arith.constant 0 : i32
    %10 = arith.addi %c0_i32_13, %c0_i32 : i32
    %11 = arith.index_cast %10 : i32 to index
    %c0_14 = arith.constant 0 : index
    %12 = vector.load %arg13[%11, %c0_14] : memref<16x128xf32, #tpu.memory_space<vmem>>, vector<1x128xf32>
    %c8_i32 = arith.constant 8 : i32
    %13 = arith.addi %c8_i32, %c0_i32 : i32
    %14 = arith.index_cast %13 : i32 to index
    %c0_15 = arith.constant 0 : index
    %15 = vector.load %arg13[%14, %c0_15] : memref<16x128xf32, #tpu.memory_space<vmem>>, vector<1x128xf32>
    %16 = tpu.concatenate %12, %15 in 0 : vector<1x128xf32>, vector<1x128xf32> -> vector<2x128xf32>
    %cst_16 = arith.constant dense<0.000000e+00> : vector<2x128xf32>
    %17 = tpu.matmul %8, %7, %cst_16 {dimension_numbers = #tpu.dot_dimension_numbers<[1], [0], [0], [1], [0, 0, 1, 1], [], []>} : vector<2x32xf32>, vector<32x128xf32>, vector<2x128xf32> -> vector<2x128xf32>
    %18 = arith.addf %16, %17 : vector<2x128xf32>
    %19 = arith.negf %18 : vector<2x128xf32>
    %20 = math.exp %19 : vector<2x128xf32>
    %cst_17 = arith.constant 1.000000e+00 : f32
    %21 = vector.broadcast %cst_17 : f32 to vector<2x128xf32>
    %22 = arith.addf %21, %20 : vector<2x128xf32>
    %23 = arith.divf %21, %22 : vector<2x128xf32>
    %24 = math.tanh %18 : vector<2x128xf32>
    %25 = vector.extract_strided_slice %23 {offsets = [0, 0], sizes = [2, 32], strides = [1, 1]} : vector<2x128xf32> to vector<2x32xf32>
    %26 = vector.extract_strided_slice %23 {offsets = [0, 32], sizes = [2, 32], strides = [1, 1]} : vector<2x128xf32> to vector<2x32xf32>
    %27 = vector.extract_strided_slice %24 {offsets = [0, 64], sizes = [2, 32], strides = [1, 1]} : vector<2x128xf32> to vector<2x32xf32>
    %28 = vector.extract_strided_slice %23 {offsets = [0, 96], sizes = [2, 32], strides = [1, 1]} : vector<2x128xf32> to vector<2x32xf32>
    %29 = arith.mulf %26, %9 : vector<2x32xf32>
    %30 = arith.mulf %25, %27 : vector<2x32xf32>
    %31 = arith.addf %29, %30 : vector<2x32xf32>
    %32 = math.tanh %31 : vector<2x32xf32>
    %33 = arith.mulf %28, %32 : vector<2x32xf32>
    %c2_i32 = arith.constant 2 : i32
    %34 = arith.muli %c0_i32, %c2_i32 : i32
    %35 = arith.index_cast %34 : i32 to index
    %c0_18 = arith.constant 0 : index
    %36 = vector.load %arg14[%35, %c0_18] : memref<16x32xf32, #tpu.memory_space<vmem>>, vector<2x32xf32>
    tpu.vector_store %arg14[%35, %c0_18], %33 {strides = array<i32>} : memref<16x32xf32, #tpu.memory_space<vmem>>, vector<2x32xf32>,
    %c1_i32 = arith.constant 1 : i32
    %c0_i32_19 = arith.constant 0 : i32
    %37 = arith.addi %c0_i32_19, %c1_i32 : i32
    %38 = arith.index_cast %37 : i32 to index
    %c0_20 = arith.constant 0 : index
    %39 = vector.load %arg13[%38, %c0_20] : memref<16x128xf32, #tpu.memory_space<vmem>>, vector<1x128xf32>
    %c8_i32_21 = arith.constant 8 : i32
    %40 = arith.addi %c8_i32_21, %c1_i32 : i32
    %41 = arith.index_cast %40 : i32 to index
    %c0_22 = arith.constant 0 : index
    %42 = vector.load %arg13[%41, %c0_22] : memref<16x128xf32, #tpu.memory_space<vmem>>, vector<1x128xf32>
    %43 = tpu.concatenate %39, %42 in 0 : vector<1x128xf32>, vector<1x128xf32> -> vector<2x128xf32>
    %cst_23 = arith.constant dense<0.000000e+00> : vector<2x128xf32>
    %44 = tpu.matmul %33, %7, %cst_23 {dimension_numbers = #tpu.dot_dimension_numbers<[1], [0], [0], [1], [0, 0, 1, 1], [], []>} : vector<2x32xf32>, vector<32x128xf32>, vector<2x128xf32> -> vector<2x128xf32>
    %45 = arith.addf %43, %44 : vector<2x128xf32>
    %46 = arith.negf %45 : vector<2x128xf32>
    %47 = math.exp %46 : vector<2x128xf32>
    %cst_24 = arith.constant 1.000000e+00 : f32
    %48 = vector.broadcast %cst_24 : f32 to vector<2x128xf32>
    %49 = arith.addf %48, %47 : vector<2x128xf32>
    %50 = arith.divf %48, %49 : vector<2x128xf32>
    %51 = math.tanh %45 : vector<2x128xf32>
    %52 = vector.extract_strided_slice %50 {offsets = [0, 0], sizes = [2, 32], strides = [1, 1]} : vector<2x128xf32> to vector<2x32xf32>
    %53 = vector.extract_strided_slice %50 {offsets = [0, 32], sizes = [2, 32], strides = [1, 1]} : vector<2x128xf32> to vector<2x32xf32>
    %54 = vector.extract_strided_slice %51 {offsets = [0, 64], sizes = [2, 32], strides = [1, 1]} : vector<2x128xf32> to vector<2x32xf32>
    %55 = vector.extract_strided_slice %50 {offsets = [0, 96], sizes = [2, 32], strides = [1, 1]} : vector<2x128xf32> to vector<2x32xf32>
    %56 = arith.mulf %53, %31 : vector<2x32xf32>
    %57 = arith.mulf %52, %54 : vector<2x32xf32>
    %58 = arith.addf %56, %57 : vector<2x32xf32>
    %59 = math.tanh %58 : vector<2x32xf32>
    %60 = arith.mulf %55, %59 : vector<2x32xf32>
    %c2_i32_25 = arith.constant 2 : i32
    %61 = arith.muli %c1_i32, %c2_i32_25 : i32
    %62 = arith.index_cast %61 : i32 to index
    %c0_26 = arith.constant 0 : index
    %63 = vector.load %arg14[%62, %c0_26] : memref<16x32xf32, #tpu.memory_space<vmem>>, vector<2x32xf32>
    tpu.vector_store %arg14[%62, %c0_26], %60 {strides = array<i32>} : memref<16x32xf32, #tpu.memory_space<vmem>>, vector<2x32xf32>,
    %c2_i32_27 = arith.constant 2 : i32
    %c0_i32_28 = arith.constant 0 : i32
    %64 = arith.addi %c0_i32_28, %c2_i32_27 : i32
    %65 = arith.index_cast %64 : i32 to index
    %c0_29 = arith.constant 0 : index
    %66 = vector.load %arg13[%65, %c0_29] : memref<16x128xf32, #tpu.memory_space<vmem>>, vector<1x128xf32>
    %c8_i32_30 = arith.constant 8 : i32
    %67 = arith.addi %c8_i32_30, %c2_i32_27 : i32
    %68 = arith.index_cast %67 : i32 to index
    %c0_31 = arith.constant 0 : index
    %69 = vector.load %arg13[%68, %c0_31] : memref<16x128xf32, #tpu.memory_space<vmem>>, vector<1x128xf32>
    %70 = tpu.concatenate %66, %69 in 0 : vector<1x128xf32>, vector<1x128xf32> -> vector<2x128xf32>
    %cst_32 = arith.constant dense<0.000000e+00> : vector<2x128xf32>
    %71 = tpu.matmul %60, %7, %cst_32 {dimension_numbers = #tpu.dot_dimension_numbers<[1], [0], [0], [1], [0, 0, 1, 1], [], []>} : vector<2x32xf32>, vector<32x128xf32>, vector<2x128xf32> -> vector<2x128xf32>
    %72 = arith.addf %70, %71 : vector<2x128xf32>
    %73 = arith.negf %72 : vector<2x128xf32>
    %74 = math.exp %73 : vector<2x128xf32>
    %cst_33 = arith.constant 1.000000e+00 : f32
    %75 = vector.broadcast %cst_33 : f32 to vector<2x128xf32>
    %76 = arith.addf %75, %74 : vector<2x128xf32>
    %77 = arith.divf %75, %76 : vector<2x128xf32>
    %78 = math.tanh %72 : vector<2x128xf32>
    %79 = vector.extract_strided_slice %77 {offsets = [0, 0], sizes = [2, 32], strides = [1, 1]} : vector<2x128xf32> to vector<2x32xf32>
    %80 = vector.extract_strided_slice %77 {offsets = [0, 32], sizes = [2, 32], strides = [1, 1]} : vector<2x128xf32> to vector<2x32xf32>
    %81 = vector.extract_strided_slice %78 {offsets = [0, 64], sizes = [2, 32], strides = [1, 1]} : vector<2x128xf32> to vector<2x32xf32>
    %82 = vector.extract_strided_slice %77 {offsets = [0, 96], sizes = [2, 32], strides = [1, 1]} : vector<2x128xf32> to vector<2x32xf32>
    %83 = arith.mulf %80, %58 : vector<2x32xf32>
    %84 = arith.mulf %79, %81 : vector<2x32xf32>
    %85 = arith.addf %83, %84 : vector<2x32xf32>
    %86 = math.tanh %85 : vector<2x32xf32>
    %87 = arith.mulf %82, %86 : vector<2x32xf32>
    %c2_i32_34 = arith.constant 2 : i32
    %88 = arith.muli %c2_i32_27, %c2_i32_34 : i32
    %89 = arith.index_cast %88 : i32 to index
    %c0_35 = arith.constant 0 : index
    %90 = vector.load %arg14[%89, %c0_35] : memref<16x32xf32, #tpu.memory_space<vmem>>, vector<2x32xf32>
    tpu.vector_store %arg14[%89, %c0_35], %87 {strides = array<i32>} : memref<16x32xf32, #tpu.memory_space<vmem>>, vector<2x32xf32>,
    %c3_i32 = arith.constant 3 : i32
    %c0_i32_36 = arith.constant 0 : i32
    %91 = arith.addi %c0_i32_36, %c3_i32 : i32
    %92 = arith.index_cast %91 : i32 to index
    %c0_37 = arith.constant 0 : index
    %93 = vector.load %arg13[%92, %c0_37] : memref<16x128xf32, #tpu.memory_space<vmem>>, vector<1x128xf32>
    %c8_i32_38 = arith.constant 8 : i32
    %94 = arith.addi %c8_i32_38, %c3_i32 : i32
    %95 = arith.index_cast %94 : i32 to index
    %c0_39 = arith.constant 0 : index
    %96 = vector.load %arg13[%95, %c0_39] : memref<16x128xf32, #tpu.memory_space<vmem>>, vector<1x128xf32>
    %97 = tpu.concatenate %93, %96 in 0 : vector<1x128xf32>, vector<1x128xf32> -> vector<2x128xf32>
    %cst_40 = arith.constant dense<0.000000e+00> : vector<2x128xf32>
    %98 = tpu.matmul %87, %7, %cst_40 {dimension_numbers = #tpu.dot_dimension_numbers<[1], [0], [0], [1], [0, 0, 1, 1], [], []>} : vector<2x32xf32>, vector<32x128xf32>, vector<2x128xf32> -> vector<2x128xf32>
    %99 = arith.addf %97, %98 : vector<2x128xf32>
    %100 = arith.negf %99 : vector<2x128xf32>
    %101 = math.exp %100 : vector<2x128xf32>
    %cst_41 = arith.constant 1.000000e+00 : f32
    %102 = vector.broadcast %cst_41 : f32 to vector<2x128xf32>
    %103 = arith.addf %102, %101 : vector<2x128xf32>
    %104 = arith.divf %102, %103 : vector<2x128xf32>
    %105 = math.tanh %99 : vector<2x128xf32>
    %106 = vector.extract_strided_slice %104 {offsets = [0, 0], sizes = [2, 32], strides = [1, 1]} : vector<2x128xf32> to vector<2x32xf32>
    %107 = vector.extract_strided_slice %104 {offsets = [0, 32], sizes = [2, 32], strides = [1, 1]} : vector<2x128xf32> to vector<2x32xf32>
    %108 = vector.extract_strided_slice %105 {offsets = [0, 64], sizes = [2, 32], strides = [1, 1]} : vector<2x128xf32> to vector<2x32xf32>
    %109 = vector.extract_strided_slice %104 {offsets = [0, 96], sizes = [2, 32], strides = [1, 1]} : vector<2x128xf32> to vector<2x32xf32>
    %110 = arith.mulf %107, %85 : vector<2x32xf32>
    %111 = arith.mulf %106, %108 : vector<2x32xf32>
    %112 = arith.addf %110, %111 : vector<2x32xf32>
    %113 = math.tanh %112 : vector<2x32xf32>
    %114 = arith.mulf %109, %113 : vector<2x32xf32>
    %c2_i32_42 = arith.constant 2 : i32
    %115 = arith.muli %c3_i32, %c2_i32_42 : i32
    %116 = arith.index_cast %115 : i32 to index
    %c0_43 = arith.constant 0 : index
    %117 = vector.load %arg14[%116, %c0_43] : memref<16x32xf32, #tpu.memory_space<vmem>>, vector<2x32xf32>
    tpu.vector_store %arg14[%116, %c0_43], %114 {strides = array<i32>} : memref<16x32xf32, #tpu.memory_space<vmem>>, vector<2x32xf32>,
    %c4_i32 = arith.constant 4 : i32
    %c0_i32_44 = arith.constant 0 : i32
    %118 = arith.addi %c0_i32_44, %c4_i32 : i32
    %119 = arith.index_cast %118 : i32 to index
    %c0_45 = arith.constant 0 : index
    %120 = vector.load %arg13[%119, %c0_45] : memref<16x128xf32, #tpu.memory_space<vmem>>, vector<1x128xf32>
    %c8_i32_46 = arith.constant 8 : i32
    %121 = arith.addi %c8_i32_46, %c4_i32 : i32
    %122 = arith.index_cast %121 : i32 to index
    %c0_47 = arith.constant 0 : index
    %123 = vector.load %arg13[%122, %c0_47] : memref<16x128xf32, #tpu.memory_space<vmem>>, vector<1x128xf32>
    %124 = tpu.concatenate %120, %123 in 0 : vector<1x128xf32>, vector<1x128xf32> -> vector<2x128xf32>
    %cst_48 = arith.constant dense<0.000000e+00> : vector<2x128xf32>
    %125 = tpu.matmul %114, %7, %cst_48 {dimension_numbers = #tpu.dot_dimension_numbers<[1], [0], [0], [1], [0, 0, 1, 1], [], []>} : vector<2x32xf32>, vector<32x128xf32>, vector<2x128xf32> -> vector<2x128xf32>
    %126 = arith.addf %124, %125 : vector<2x128xf32>
    %127 = arith.negf %126 : vector<2x128xf32>
    %128 = math.exp %127 : vector<2x128xf32>
    %cst_49 = arith.constant 1.000000e+00 : f32
    %129 = vector.broadcast %cst_49 : f32 to vector<2x128xf32>
    %130 = arith.addf %129, %128 : vector<2x128xf32>
    %131 = arith.divf %129, %130 : vector<2x128xf32>
    %132 = math.tanh %126 : vector<2x128xf32>
    %133 = vector.extract_strided_slice %131 {offsets = [0, 0], sizes = [2, 32], strides = [1, 1]} : vector<2x128xf32> to vector<2x32xf32>
    %134 = vector.extract_strided_slice %131 {offsets = [0, 32], sizes = [2, 32], strides = [1, 1]} : vector<2x128xf32> to vector<2x32xf32>
    %135 = vector.extract_strided_slice %132 {offsets = [0, 64], sizes = [2, 32], strides = [1, 1]} : vector<2x128xf32> to vector<2x32xf32>
    %136 = vector.extract_strided_slice %131 {offsets = [0, 96], sizes = [2, 32], strides = [1, 1]} : vector<2x128xf32> to vector<2x32xf32>
    %137 = arith.mulf %134, %112 : vector<2x32xf32>
    %138 = arith.mulf %133, %135 : vector<2x32xf32>
    %139 = arith.addf %137, %138 : vector<2x32xf32>
    %140 = math.tanh %139 : vector<2x32xf32>
    %141 = arith.mulf %136, %140 : vector<2x32xf32>
    %c2_i32_50 = arith.constant 2 : i32
    %142 = arith.muli %c4_i32, %c2_i32_50 : i32
    %143 = arith.index_cast %142 : i32 to index
    %c0_51 = arith.constant 0 : index
    %144 = vector.load %arg14[%143, %c0_51] : memref<16x32xf32, #tpu.memory_space<vmem>>, vector<2x32xf32>
    tpu.vector_store %arg14[%143, %c0_51], %141 {strides = array<i32>} : memref<16x32xf32, #tpu.memory_space<vmem>>, vector<2x32xf32>,
    %c5_i32 = arith.constant 5 : i32
    %c0_i32_52 = arith.constant 0 : i32
    %145 = arith.addi %c0_i32_52, %c5_i32 : i32
    %146 = arith.index_cast %145 : i32 to index
    %c0_53 = arith.constant 0 : index
    %147 = vector.load %arg13[%146, %c0_53] : memref<16x128xf32, #tpu.memory_space<vmem>>, vector<1x128xf32>
    %c8_i32_54 = arith.constant 8 : i32
    %148 = arith.addi %c8_i32_54, %c5_i32 : i32
    %149 = arith.index_cast %148 : i32 to index
    %c0_55 = arith.constant 0 : index
    %150 = vector.load %arg13[%149, %c0_55] : memref<16x128xf32, #tpu.memory_space<vmem>>, vector<1x128xf32>
    %151 = tpu.concatenate %147, %150 in 0 : vector<1x128xf32>, vector<1x128xf32> -> vector<2x128xf32>
    %cst_56 = arith.constant dense<0.000000e+00> : vector<2x128xf32>
    %152 = tpu.matmul %141, %7, %cst_56 {dimension_numbers = #tpu.dot_dimension_numbers<[1], [0], [0], [1], [0, 0, 1, 1], [], []>} : vector<2x32xf32>, vector<32x128xf32>, vector<2x128xf32> -> vector<2x128xf32>
    %153 = arith.addf %151, %152 : vector<2x128xf32>
    %154 = arith.negf %153 : vector<2x128xf32>
    %155 = math.exp %154 : vector<2x128xf32>
    %cst_57 = arith.constant 1.000000e+00 : f32
    %156 = vector.broadcast %cst_57 : f32 to vector<2x128xf32>
    %157 = arith.addf %156, %155 : vector<2x128xf32>
    %158 = arith.divf %156, %157 : vector<2x128xf32>
    %159 = math.tanh %153 : vector<2x128xf32>
    %160 = vector.extract_strided_slice %158 {offsets = [0, 0], sizes = [2, 32], strides = [1, 1]} : vector<2x128xf32> to vector<2x32xf32>
    %161 = vector.extract_strided_slice %158 {offsets = [0, 32], sizes = [2, 32], strides = [1, 1]} : vector<2x128xf32> to vector<2x32xf32>
    %162 = vector.extract_strided_slice %159 {offsets = [0, 64], sizes = [2, 32], strides = [1, 1]} : vector<2x128xf32> to vector<2x32xf32>
    %163 = vector.extract_strided_slice %158 {offsets = [0, 96], sizes = [2, 32], strides = [1, 1]} : vector<2x128xf32> to vector<2x32xf32>
    %164 = arith.mulf %161, %139 : vector<2x32xf32>
    %165 = arith.mulf %160, %162 : vector<2x32xf32>
    %166 = arith.addf %164, %165 : vector<2x32xf32>
    %167 = math.tanh %166 : vector<2x32xf32>
    %168 = arith.mulf %163, %167 : vector<2x32xf32>
    %c2_i32_58 = arith.constant 2 : i32
    %169 = arith.muli %c5_i32, %c2_i32_58 : i32
    %170 = arith.index_cast %169 : i32 to index
    %c0_59 = arith.constant 0 : index
    %171 = vector.load %arg14[%170, %c0_59] : memref<16x32xf32, #tpu.memory_space<vmem>>, vector<2x32xf32>
    tpu.vector_store %arg14[%170, %c0_59], %168 {strides = array<i32>} : memref<16x32xf32, #tpu.memory_space<vmem>>, vector<2x32xf32>,
    %c6_i32 = arith.constant 6 : i32
    %c0_i32_60 = arith.constant 0 : i32
    %172 = arith.addi %c0_i32_60, %c6_i32 : i32
    %173 = arith.index_cast %172 : i32 to index
    %c0_61 = arith.constant 0 : index
    %174 = vector.load %arg13[%173, %c0_61] : memref<16x128xf32, #tpu.memory_space<vmem>>, vector<1x128xf32>
    %c8_i32_62 = arith.constant 8 : i32
    %175 = arith.addi %c8_i32_62, %c6_i32 : i32
    %176 = arith.index_cast %175 : i32 to index
    %c0_63 = arith.constant 0 : index
    %177 = vector.load %arg13[%176, %c0_63] : memref<16x128xf32, #tpu.memory_space<vmem>>, vector<1x128xf32>
    %178 = tpu.concatenate %174, %177 in 0 : vector<1x128xf32>, vector<1x128xf32> -> vector<2x128xf32>
    %cst_64 = arith.constant dense<0.000000e+00> : vector<2x128xf32>
    %179 = tpu.matmul %168, %7, %cst_64 {dimension_numbers = #tpu.dot_dimension_numbers<[1], [0], [0], [1], [0, 0, 1, 1], [], []>} : vector<2x32xf32>, vector<32x128xf32>, vector<2x128xf32> -> vector<2x128xf32>
    %180 = arith.addf %178, %179 : vector<2x128xf32>
    %181 = arith.negf %180 : vector<2x128xf32>
    %182 = math.exp %181 : vector<2x128xf32>
    %cst_65 = arith.constant 1.000000e+00 : f32
    %183 = vector.broadcast %cst_65 : f32 to vector<2x128xf32>
    %184 = arith.addf %183, %182 : vector<2x128xf32>
    %185 = arith.divf %183, %184 : vector<2x128xf32>
    %186 = math.tanh %180 : vector<2x128xf32>
    %187 = vector.extract_strided_slice %185 {offsets = [0, 0], sizes = [2, 32], strides = [1, 1]} : vector<2x128xf32> to vector<2x32xf32>
    %188 = vector.extract_strided_slice %185 {offsets = [0, 32], sizes = [2, 32], strides = [1, 1]} : vector<2x128xf32> to vector<2x32xf32>
    %189 = vector.extract_strided_slice %186 {offsets = [0, 64], sizes = [2, 32], strides = [1, 1]} : vector<2x128xf32> to vector<2x32xf32>
    %190 = vector.extract_strided_slice %185 {offsets = [0, 96], sizes = [2, 32], strides = [1, 1]} : vector<2x128xf32> to vector<2x32xf32>
    %191 = arith.mulf %188, %166 : vector<2x32xf32>
    %192 = arith.mulf %187, %189 : vector<2x32xf32>
    %193 = arith.addf %191, %192 : vector<2x32xf32>
    %194 = math.tanh %193 : vector<2x32xf32>
    %195 = arith.mulf %190, %194 : vector<2x32xf32>
    %c2_i32_66 = arith.constant 2 : i32
    %196 = arith.muli %c6_i32, %c2_i32_66 : i32
    %197 = arith.index_cast %196 : i32 to index
    %c0_67 = arith.constant 0 : index
    %198 = vector.load %arg14[%197, %c0_67] : memref<16x32xf32, #tpu.memory_space<vmem>>, vector<2x32xf32>
    tpu.vector_store %arg14[%197, %c0_67], %195 {strides = array<i32>} : memref<16x32xf32, #tpu.memory_space<vmem>>, vector<2x32xf32>,
    %c7_i32 = arith.constant 7 : i32
    %c0_i32_68 = arith.constant 0 : i32
    %199 = arith.addi %c0_i32_68, %c7_i32 : i32
    %200 = arith.index_cast %199 : i32 to index
    %c0_69 = arith.constant 0 : index
    %201 = vector.load %arg13[%200, %c0_69] : memref<16x128xf32, #tpu.memory_space<vmem>>, vector<1x128xf32>
    %c8_i32_70 = arith.constant 8 : i32
    %202 = arith.addi %c8_i32_70, %c7_i32 : i32
    %203 = arith.index_cast %202 : i32 to index
    %c0_71 = arith.constant 0 : index
    %204 = vector.load %arg13[%203, %c0_71] : memref<16x128xf32, #tpu.memory_space<vmem>>, vector<1x128xf32>
    %205 = tpu.concatenate %201, %204 in 0 : vector<1x128xf32>, vector<1x128xf32> -> vector<2x128xf32>
    %cst_72 = arith.constant dense<0.000000e+00> : vector<2x128xf32>
    %206 = tpu.matmul %195, %7, %cst_72 {dimension_numbers = #tpu.dot_dimension_numbers<[1], [0], [0], [1], [0, 0, 1, 1], [], []>} : vector<2x32xf32>, vector<32x128xf32>, vector<2x128xf32> -> vector<2x128xf32>
    %207 = arith.addf %205, %206 : vector<2x128xf32>
    %208 = arith.negf %207 : vector<2x128xf32>
    %209 = math.exp %208 : vector<2x128xf32>
    %cst_73 = arith.constant 1.000000e+00 : f32
    %210 = vector.broadcast %cst_73 : f32 to vector<2x128xf32>
    %211 = arith.addf %210, %209 : vector<2x128xf32>
    %212 = arith.divf %210, %211 : vector<2x128xf32>
    %213 = math.tanh %207 : vector<2x128xf32>
    %214 = vector.extract_strided_slice %212 {offsets = [0, 0], sizes = [2, 32], strides = [1, 1]} : vector<2x128xf32> to vector<2x32xf32>
    %215 = vector.extract_strided_slice %212 {offsets = [0, 32], sizes = [2, 32], strides = [1, 1]} : vector<2x128xf32> to vector<2x32xf32>
    %216 = vector.extract_strided_slice %213 {offsets = [0, 64], sizes = [2, 32], strides = [1, 1]} : vector<2x128xf32> to vector<2x32xf32>
    %217 = vector.extract_strided_slice %212 {offsets = [0, 96], sizes = [2, 32], strides = [1, 1]} : vector<2x128xf32> to vector<2x32xf32>
    %218 = arith.mulf %215, %193 : vector<2x32xf32>
    %219 = arith.mulf %214, %216 : vector<2x32xf32>
    %220 = arith.addf %218, %219 : vector<2x32xf32>
    %221 = math.tanh %220 : vector<2x32xf32>
    %222 = arith.mulf %217, %221 : vector<2x32xf32>
    %c2_i32_74 = arith.constant 2 : i32
    %223 = arith.muli %c7_i32, %c2_i32_74 : i32
    %224 = arith.index_cast %223 : i32 to index
    %c0_75 = arith.constant 0 : index
    %225 = vector.load %arg14[%224, %c0_75] : memref<16x32xf32, #tpu.memory_space<vmem>>, vector<2x32xf32>
    tpu.vector_store %arg14[%224, %c0_75], %222 {strides = array<i32>} : memref<16x32xf32, #tpu.memory_space<vmem>>, vector<2x32xf32>,
    %c8_i32_76 = arith.constant 8 : i32
    %c0_77 = arith.constant 0 : index
    %c0_78 = arith.constant 0 : index
    %226 = vector.load %arg11[%c0_77, %c0_78] : memref<2x32xf32, #tpu.memory_space<vmem>>, vector<2x32xf32>
    tpu.vector_store %arg11[%c0_77, %c0_78], %222 {strides = array<i32>} : memref<2x32xf32, #tpu.memory_space<vmem>>, vector<2x32xf32>,
    %c0_79 = arith.constant 0 : index
    %c0_80 = arith.constant 0 : index
    %227 = vector.load %arg12[%c0_79, %c0_80] : memref<2x32xf32, #tpu.memory_space<vmem>>, vector<2x32xf32>
    tpu.vector_store %arg12[%c0_79, %c0_80], %220 {strides = array<i32>} : memref<2x32xf32, #tpu.memory_space<vmem>>, vector<2x32xf32>,
    %c0_81 = arith.constant 0 : index
    %c0_82 = arith.constant 0 : index
    %228 = vector.load %arg14[%c0_81, %c0_82] : memref<16x32xf32, #tpu.memory_space<vmem>>, vector<16x32xf32>
    %c0_83 = arith.constant 0 : index
    %c0_84 = arith.constant 0 : index
    %229 = vector.load %arg6[%c0_83, %c0_84] : memref<32x64xf32, #tpu.memory_space<vmem>>, vector<32x64xf32>
    %cst_85 = arith.constant dense<0.000000e+00> : vector<16x64xf32>
    %230 = tpu.matmul %228, %229, %cst_85 {dimension_numbers = #tpu.dot_dimension_numbers<[1], [0], [0], [1], [0, 0, 1, 1], [], []>} : vector<16x32xf32>, vector<32x64xf32>, vector<16x64xf32> -> vector<16x64xf32>
    %c0_86 = arith.constant 0 : index
    %c0_87 = arith.constant 0 : index
    %231 = vector.load %arg7[%c0_86, %c0_87] : memref<1x64xf32, #tpu.memory_space<vmem>>, vector<1x64xf32>
    %232 = vector.broadcast %231 : vector<1x64xf32> to vector<16x64xf32>
    %233 = arith.addf %230, %232 : vector<16x64xf32>
    %234 = math.tanh %233 : vector<16x64xf32>
    %c0_88 = arith.constant 0 : index
    %c0_89 = arith.constant 0 : index
    %235 = vector.load %arg8[%c0_88, %c0_89] : memref<64x60xf32, #tpu.memory_space<vmem>>, vector<64x60xf32>
    %cst_90 = arith.constant dense<0.000000e+00> : vector<16x60xf32>
    %236 = tpu.matmul %234, %235, %cst_90 {dimension_numbers = #tpu.dot_dimension_numbers<[1], [0], [0], [1], [0, 0, 1, 1], [], []>} : vector<16x64xf32>, vector<64x60xf32>, vector<16x60xf32> -> vector<16x60xf32>
    %c0_91 = arith.constant 0 : index
    %c0_92 = arith.constant 0 : index
    %237 = vector.load %arg9[%c0_91, %c0_92] : memref<1x60xf32, #tpu.memory_space<vmem>>, vector<1x60xf32>
    %238 = vector.broadcast %237 : vector<1x60xf32> to vector<16x60xf32>
    %239 = arith.addf %236, %238 : vector<16x60xf32>
    %240 = vector.extract_strided_slice %239 {offsets = [0, 0], sizes = [16, 20], strides = [1, 1]} : vector<16x60xf32> to vector<16x20xf32>
    %241 = vector.extract_strided_slice %240 {offsets = [0, 0], sizes = [16, 4], strides = [1, 1]} : vector<16x20xf32> to vector<16x4xf32>
    %242 = vector.extract_strided_slice %240 {offsets = [0, 4], sizes = [16, 4], strides = [1, 1]} : vector<16x20xf32> to vector<16x4xf32>
    %243 = arith.maximumf %241, %242 : vector<16x4xf32>
    %244 = vector.extract_strided_slice %240 {offsets = [0, 8], sizes = [16, 4], strides = [1, 1]} : vector<16x20xf32> to vector<16x4xf32>
    %245 = arith.maximumf %243, %244 : vector<16x4xf32>
    %246 = vector.extract_strided_slice %240 {offsets = [0, 12], sizes = [16, 4], strides = [1, 1]} : vector<16x20xf32> to vector<16x4xf32>
    %247 = arith.maximumf %245, %246 : vector<16x4xf32>
    %248 = vector.extract_strided_slice %240 {offsets = [0, 16], sizes = [16, 4], strides = [1, 1]} : vector<16x20xf32> to vector<16x4xf32>
    %249 = arith.maximumf %247, %248 : vector<16x4xf32>
    %250 = tpu.concatenate %249, %249, %249, %249, %249 in 1 : vector<16x4xf32>, vector<16x4xf32>, vector<16x4xf32>, vector<16x4xf32>, vector<16x4xf32> -> vector<16x20xf32>
    %251 = arith.subf %240, %250 : vector<16x20xf32>
    %252 = math.exp %251 : vector<16x20xf32>
    %253 = vector.extract_strided_slice %252 {offsets = [0, 0], sizes = [16, 4], strides = [1, 1]} : vector<16x20xf32> to vector<16x4xf32>
    %254 = vector.extract_strided_slice %252 {offsets = [0, 4], sizes = [16, 4], strides = [1, 1]} : vector<16x20xf32> to vector<16x4xf32>
    %255 = arith.addf %253, %254 : vector<16x4xf32>
    %256 = vector.extract_strided_slice %252 {offsets = [0, 8], sizes = [16, 4], strides = [1, 1]} : vector<16x20xf32> to vector<16x4xf32>
    %257 = arith.addf %255, %256 : vector<16x4xf32>
    %258 = vector.extract_strided_slice %252 {offsets = [0, 12], sizes = [16, 4], strides = [1, 1]} : vector<16x20xf32> to vector<16x4xf32>
    %259 = arith.addf %257, %258 : vector<16x4xf32>
    %260 = vector.extract_strided_slice %252 {offsets = [0, 16], sizes = [16, 4], strides = [1, 1]} : vector<16x20xf32> to vector<16x4xf32>
    %261 = arith.addf %259, %260 : vector<16x4xf32>
    %262 = tpu.concatenate %261, %261, %261, %261, %261 in 1 : vector<16x4xf32>, vector<16x4xf32>, vector<16x4xf32>, vector<16x4xf32>, vector<16x4xf32> -> vector<16x20xf32>
    %263 = arith.divf %252, %262 : vector<16x20xf32>
    %264 = vector.extract_strided_slice %239 {offsets = [0, 20], sizes = [16, 20], strides = [1, 1]} : vector<16x60xf32> to vector<16x20xf32>
    %265 = math.exp %264 : vector<16x20xf32>
    %266 = vector.extract_strided_slice %239 {offsets = [0, 40], sizes = [16, 20], strides = [1, 1]} : vector<16x60xf32> to vector<16x20xf32>
    %267 = tpu.concatenate %263, %265, %266 in 1 : vector<16x20xf32>, vector<16x20xf32>, vector<16x20xf32> -> vector<16x60xf32>
    %c0_93 = arith.constant 0 : index
    %c0_94 = arith.constant 0 : index
    %268 = vector.load %arg10[%c0_93, %c0_94] : memref<16x60xf32, #tpu.memory_space<vmem>>, vector<16x60xf32>
    tpu.vector_store %arg10[%c0_93, %c0_94], %267 {strides = array<i32>} : memref<16x60xf32, #tpu.memory_space<vmem>>, vector<16x60xf32>,
    return
  }
}

</mosaic_0001>

<llo_original>
// kernel: tpu_custom_call.1
$region0: #{tpu_custom_call.1}
  #allocation0 [shape = 'u32[]', space=smem, size = 0x4, offset = 0x4, fixed_abs, tag = 'smem constant byte address 0x4 - core index']
  #allocation1 [shape = 'u32[144,128]{1,0:T(1,128)}', space=vmem, size = 0x12000, scoped, tag = 'internal scratch']
  #allocation2 [shape = 'f32[16,128]{1,0:T(8,128)}', space=vmem, size = 0x2000, scoped, tag = 'scratch operand']
  #allocation3 [shape = 'f32[16,32]{1,0:T(8,128)}', space=vmem, size = 0x2000, scoped, tag = 'scratch operand']
  %s0 = inlined_call_operand.hbm [shape: f32[16,16], index: 0, kind: input, shape index: {}]
  %s1 = inlined_call_operand.vmem [shape: f32[2,32], index: 1, kind: input, shape index: {}]
  %s2 = inlined_call_operand.vmem [shape: f32[2,32], index: 2, kind: input, shape index: {}]
  %s3 = inlined_call_operand.hbm [shape: f32[16,128], index: 3, kind: input, shape index: {}]
  %s4 = inlined_call_operand.hbm [shape: f32[32,128], index: 4, kind: input, shape index: {}]
  %s5 = inlined_call_operand.vmem [shape: f32[1,128], index: 5, kind: input, shape index: {}]
  %s6 = inlined_call_operand.hbm [shape: f32[32,64], index: 6, kind: input, shape index: {}]
  %s7 = inlined_call_operand.vmem [shape: f32[1,64], index: 7, kind: input, shape index: {}]
  %s8 = inlined_call_operand.hbm [shape: f32[64,60], index: 8, kind: input, shape index: {}]
  %s9 = inlined_call_operand.vmem [shape: f32[1,60], index: 9, kind: input, shape index: {}]
  %s10 = inlined_call_operand.hbm [shape: f32[16,60], index: 10, kind: output, shape index: {0}]
  %s11 = inlined_call_operand.hbm [shape: f32[2,32], index: 11, kind: output, shape index: {1}]
  %s12 = inlined_call_operand.hbm [shape: f32[2,32], index: 12, kind: output, shape index: {2}]
  %13 = xla_tuple %s10, %s11, %s12
  %s14 = sld [smem:[#allocation0]]
  $region86: #{tpu_custom_call.1} parent=0
    _
  %s16 = ssub.s32 1, %s14
  %s17 = scalar_select 0, %s16, %s14
  $region1: #{tpu_custom_call.1} parent=0
    #allocation4 [shape = 'u8[8192]{0}', space=vmem, size = 0x2000, scoped, tag = 'input window, operand 0, single buffered']
    #allocation5 [shape = 's32[1]{0}', space=sflag, size = 0x4, scoped, tag = 'scoped memory for tpu_custom_call.1']
    #allocation6 [shape = 's32[1]{0}', space=sflag, size = 0x4, scoped, tag = 'scoped memory for tpu_custom_call.1']
    #allocation7 [shape = 'u8[8192]{0}', space=vmem, size = 0x2000, scoped, tag = 'input window, operand 3, single buffered']
    #allocation8 [shape = 's32[1]{0}', space=sflag, size = 0x4, scoped, tag = 'scoped memory for tpu_custom_call.1']
    #allocation9 [shape = 'u8[16384]{0}', space=vmem, size = 0x4000, scoped, tag = 'input window, operand 4, single buffered']
    #allocation10 [shape = 'u8[16384]{0}', space=vmem, size = 0x4000, scoped, tag = 'input window, operand 6, single buffered']
    #allocation11 [shape = 's32[1]{0}', space=sflag, size = 0x4, scoped, tag = 'scoped memory for tpu_custom_call.1']
    #allocation12 [shape = 'u8[32768]{0}', space=vmem, size = 0x8000, scoped, tag = 'input window, operand 8, single buffered']
    #allocation13 [shape = 'u8[8192]{0}', space=vmem, size = 0x2000, scoped, tag = 'output window, operand 0, single buffered']
    #allocation14 [shape = 'u8[1024]{0}', space=vmem, size = 0x400, scoped, tag = 'output window, operand 1, single buffered']
    #allocation15 [shape = 's32[1]{0}', space=sflag, size = 0x4, scoped, tag = 'scoped memory for tpu_custom_call.1']
    #allocation16 [shape = 'u8[1024]{0}', space=vmem, size = 0x400, scoped, tag = 'output window, operand 2, single buffered']
    %18 = vsyncpa [#allocation5], 0
    %19 = vsyncpa [#allocation8], 0
    %20 = vsyncpa [#allocation11], 0
    %21 = vsyncpa [#allocation6], 0
    %22 = vsyncpa [#allocation15], 0
    // Predicated region
    $region2: #{tpu_custom_call.1} parent=1 // pred_check
      _
    $region3: #{tpu_custom_call.1} parent=1 // pred_check_branch
      %24 = sbr.rel (0) target = $region5
    $region4: #{tpu_custom_call.1} parent=1 // pred_region
      %s26 = ssub.s32 256, 256
      %27 = vsyncadd [#allocation5], %s26
      %s28 = sshll.u32 [#allocation4], 4
      %s29 = int_to_ptr.vmem [resolvable:$true] %s28
      %34 = dma.hbm_to_vmem [thread:$0]  %s0, 256, %s29, [#allocation5], 128, 128, 8
    $region5: #{tpu_custom_call.1} parent=1 // pred_fallthru
      _
    // Predicated region
    $region6: #{tpu_custom_call.1} parent=1 // pred_check
      _
    $region7: #{tpu_custom_call.1} parent=1 // pred_check_branch
      %36 = sbr.rel (0) target = $region9
    $region8: #{tpu_custom_call.1} parent=1 // pred_region
      _
    $region9: #{tpu_custom_call.1} parent=1 // pred_fallthru
      _
    // Predicated region
    $region10: #{tpu_custom_call.1} parent=1 // pred_check
      _
    $region11: #{tpu_custom_call.1} parent=1 // pred_check_branch
      %38 = sbr.rel (0) target = $region13
    $region12: #{tpu_custom_call.1} parent=1 // pred_region
      _
    $region13: #{tpu_custom_call.1} parent=1 // pred_fallthru
      _
    // Predicated region
    $region14: #{tpu_custom_call.1} parent=1 // pred_check
      _
    $region15: #{tpu_custom_call.1} parent=1 // pred_check_branch
      %40 = sbr.rel (0) target = $region17
    $region16: #{tpu_custom_call.1} parent=1 // pred_region
      %s42 = ssub.s32 256, 256
      %43 = vsyncadd [#allocation8], %s42
      %s44 = sshll.u32 [#allocation7], 4
      %s45 = int_to_ptr.vmem [resolvable:$true] %s44
      %50 = dma.hbm_to_vmem [thread:$0]  %s3, 256, %s45, [#allocation8], 128, 128, 8
    $region17: #{tpu_custom_call.1} parent=1 // pred_fallthru
      _
    // Predicated region
    $region18: #{tpu_custom_call.1} parent=1 // pred_check
      _
    $region19: #{tpu_custom_call.1} parent=1 // pred_check_branch
      %52 = sbr.rel (0) target = $region21
    $region20: #{tpu_custom_call.1} parent=1 // pred_region
      %s54 = ssub.s32 512, 512
      %55 = vsyncadd [#allocation8], %s54
      %s56 = sshll.u32 [#allocation9], 4
      %s57 = int_to_ptr.vmem [resolvable:$true] %s56
      %62 = dma.hbm_to_vmem [thread:$0]  %s4, 512, %s57, [#allocation8], 128, 128, 8
    $region21: #{tpu_custom_call.1} parent=1 // pred_fallthru
      _
    // Predicated region
    $region22: #{tpu_custom_call.1} parent=1 // pred_check
      _
    $region23: #{tpu_custom_call.1} parent=1 // pred_check_branch
      %64 = sbr.rel (0) target = $region25
    $region24: #{tpu_custom_call.1} parent=1 // pred_region
      _
    $region25: #{tpu_custom_call.1} parent=1 // pred_fallthru
      _
    // Predicated region
    $region26: #{tpu_custom_call.1} parent=1 // pred_check
      _
    $region27: #{tpu_custom_call.1} parent=1 // pred_check_branch
      %66 = sbr.rel (0) target = $region29
    $region28: #{tpu_custom_call.1} parent=1 // pred_region
      %s68 = ssub.s32 512, 512
      %69 = vsyncadd [#allocation11], %s68
      %s70 = sshll.u32 [#allocation10], 4
      %s71 = int_to_ptr.vmem [resolvable:$true] %s70
      %76 = dma.hbm_to_vmem [thread:$0]  %s6, 512, %s71, [#allocation11], 128, 128, 8
    $region29: #{tpu_custom_call.1} parent=1 // pred_fallthru
      _
    // Predicated region
    $region30: #{tpu_custom_call.1} parent=1 // pred_check
      _
    $region31: #{tpu_custom_call.1} parent=1 // pred_check_branch
      %78 = sbr.rel (0) target = $region33
    $region32: #{tpu_custom_call.1} parent=1 // pred_region
      _
    $region33: #{tpu_custom_call.1} parent=1 // pred_fallthru
      _
    // Predicated region
    $region34: #{tpu_custom_call.1} parent=1 // pred_check
      _
    $region35: #{tpu_custom_call.1} parent=1 // pred_check_branch
      %80 = sbr.rel (0) target = $region37
    $region36: #{tpu_custom_call.1} parent=1 // pred_region
      %s82 = ssub.s32 1024, 1024
      %83 = vsyncadd [#allocation11], %s82
      %s84 = sshll.u32 [#allocation12], 4
      %s85 = int_to_ptr.vmem [resolvable:$true] %s84
      %90 = dma.hbm_to_vmem [thread:$0]  %s8, 1024, %s85, [#allocation11], 128, 128, 8
    $region37: #{tpu_custom_call.1} parent=1 // pred_fallthru
      _
    // Predicated region
    $region38: #{tpu_custom_call.1} parent=1 // pred_check
      _
    $region39: #{tpu_custom_call.1} parent=1 // pred_check_branch
      %92 = sbr.rel (0) target = $region41
    $region40: #{tpu_custom_call.1} parent=1 // pred_region
      _
    $region41: #{tpu_custom_call.1} parent=1 // pred_fallthru
      _
    // Predicated region
    $region42: #{tpu_custom_call.1} parent=1 // pred_check
      _
    $region43: #{tpu_custom_call.1} parent=1 // pred_check_branch
      %94 = sbr.rel (0) target = $region45
    $region44: #{tpu_custom_call.1} parent=1 // pred_region
      %95 = dma.done [#allocation5], 256
    $region45: #{tpu_custom_call.1} parent=1 // pred_fallthru
      _
    // Predicated region
    $region46: #{tpu_custom_call.1} parent=1 // pred_check
      _
    $region47: #{tpu_custom_call.1} parent=1 // pred_check_branch
      %97 = sbr.rel (0) target = $region49
    $region48: #{tpu_custom_call.1} parent=1 // pred_region
      %98 = dma.done [#allocation8], 256
    $region49: #{tpu_custom_call.1} parent=1 // pred_fallthru
      _
    // Predicated region
    $region50: #{tpu_custom_call.1} parent=1 // pred_check
      _
    $region51: #{tpu_custom_call.1} parent=1 // pred_check_branch
      %100 = sbr.rel (0) target = $region53
    $region52: #{tpu_custom_call.1} parent=1 // pred_region
      %101 = dma.done [#allocation8], 512
    $region53: #{tpu_custom_call.1} parent=1 // pred_fallthru
      _
    // Predicated region
    $region54: #{tpu_custom_call.1} parent=1 // pred_check
      _
    $region55: #{tpu_custom_call.1} parent=1 // pred_check_branch
      %103 = sbr.rel (0) target = $region57
    $region56: #{tpu_custom_call.1} parent=1 // pred_region
      %104 = dma.done [#allocation11], 512
    $region57: #{tpu_custom_call.1} parent=1 // pred_fallthru
      _
    // Predicated region
    $region58: #{tpu_custom_call.1} parent=1 // pred_check
      _
    $region59: #{tpu_custom_call.1} parent=1 // pred_check_branch
      %106 = sbr.rel (0) target = $region61
    $region60: #{tpu_custom_call.1} parent=1 // pred_region
      %107 = dma.done [#allocation11], 1024
    $region61: #{tpu_custom_call.1} parent=1 // pred_fallthru
      _
    %v108 = vld [vmem:[#allocation4] sm:$0xff]
    %v109 = vld [vmem:[#allocation4 + $0x8] sm:$0xff]
    %v110 = vld [vmem:[#allocation7] sm:$0xff]
    %v111 = vld [vmem:[#allocation7 + $0x8] sm:$0xff]
    %v112 = vld [vmem:[%s5] sm:$0x1]
    %v114 = vlaneseq
    %v115 = vshrl.u32 %v114, 7
    %v116 = vsub.s32 0, %v115
    %v117 = vrot.slane %v112, %v116
    %vm119 = vcmask 130048
    %v121 = vsel %vm119, %v108, 0
    %v124 = vsel %vm119, %v109, 0
    %126 = vmatprep.subr.mxu0 0.0
    %127 = vmatpush1.msra.mxu0 %v110
    %128 = vmatprep.subr.mxu0 0.0
    %129 = vmatpush1.msra.mxu0 %v111
    %130 = vmatprep.subr.mxu0 0.0
    %131 = vmatpush1.msra.mxu0 0.0
    %132 = vmatprep.subr.mxu0 0.0
    %133 = vmatpush1.msra.mxu0 0.0
    %134 = vmatprep.subr.mxu0 0.0
    %135 = vmatpush1.msra.mxu0 0.0
    %136 = vmatprep.subr.mxu0 0.0
    %137 = vmatpush1.msra.mxu0 0.0
    %138 = vmatprep.subr.mxu0 0.0
    %139 = vmatpush1.msra.mxu0 0.0
    %140 = vmatprep.subr.mxu0 0.0
    %141 = vmatpush1.msra.mxu0 0.0
    %142 = vmatprep.subr.mxu0 0.0
    %143 = vmatpush1.msra.mxu0 0.0
    %144 = vmatprep.subr.mxu0 0.0
    %145 = vmatpush1.msra.mxu0 0.0
    %146 = vmatprep.subr.mxu0 0.0
    %147 = vmatpush1.msra.mxu0 0.0
    %148 = vmatprep.subr.mxu0 0.0
    %149 = vmatpush1.msra.mxu0 0.0
    %150 = vmatprep.subr.mxu0 0.0
    %151 = vmatpush1.msra.mxu0 0.0
    %152 = vmatprep.subr.mxu0 0.0
    %153 = vmatpush1.msra.mxu0 0.0
    %154 = vmatprep.subr.mxu0 0.0
    %155 = vmatpush1.msra.mxu0 0.0
    %156 = vmatprep.subr.mxu0 0.0
    %157 = vmatpush1.msra.mxu0 0.0
    %158 = vmatprep.subr.mxu0 0.0
    %159 = vmatpush1.msra.mxu0 0.0
    %160 = vmatprep.subr.mxu0 0.0
    %161 = vmatpush1.msra.mxu0 0.0
    %162 = vmatprep.subr.mxu0 0.0
    %163 = vmatpush1.msra.mxu0 0.0
    %164 = vmatprep.subr.mxu0 0.0
    %165 = vmatpush1.msra.mxu0 0.0
    %166 = vmatprep.subr.mxu0 0.0
    %167 = vmatpush1.msra.mxu0 0.0
    %168 = vmatprep.subr.mxu0 0.0
    %169 = vmatpush1.msra.mxu0 0.0
    %170 = vmatprep.subr.mxu0 0.0
    %171 = vmatpush1.msra.mxu0 0.0
    %172 = vmatprep.subr.mxu0 0.0
    %173 = vmatpush1.msra.mxu0 0.0
    %174 = vmatprep.subr.mxu0 0.0
    %175 = vmatpush1.msra.mxu0 0.0
    %176 = vmatprep.subr.mxu0 0.0
    %177 = vmatpush1.msra.mxu0 0.0
    %178 = vmatprep.subr.mxu0 0.0
    %179 = vmatpush1.msra.mxu0 0.0
    %180 = vmatprep.subr.mxu0 0.0
    %181 = vmatpush1.msra.mxu0 0.0
    %182 = vmatprep.subr.mxu0 0.0
    %183 = vmatpush1.msra.mxu0 0.0
    %184 = vmatprep.subr.mxu0 0.0
    %185 = vmatpush1.msra.mxu0 0.0
    %186 = vmatprep.subr.mxu0 0.0
    %187 = vmatpush1.msra.mxu0 0.0
    %188 = vmatprep.subr.mxu0 0.0
    %189 = vmatpush1.msra.mxu0 0.0
    %190 = vmatprep.mubr.f32.mxu0 0.0
    %191 = vmatmul.mubr.f32.gmra.mrb[0].mxu0 %v121
    %v192 = vpop.f32.mrb[0].mxu0
    %v193 = vadd.f32 %v117, %v192
    %v194 = vpop.f32.mrb[0].mxu0
    %195 = vmatprep.mubr.f32.mxu0 0.0
    %196 = vmatmul.mubr.f32.gmra.mrb[0].mxu0 %v124
    %v197 = vpop.f32.mrb[0].mxu0
    %v198 = vadd.f32 %v117, %v197
    %v199 = vpop.f32.mrb[0].mxu0
    %200 = vdwg.mxu0
    %201 = vst [vmem:[#allocation2] sm:$0xff] %v193
    %202 = vst [vmem:[#allocation2 + $0x8] sm:$0xff] %v198
    %v203 = vld [vmem:[#allocation9] sm:$0xff]
    %v204 = vld [vmem:[#allocation9 + $0x8] sm:$0xff]
    %v205 = vld [vmem:[#allocation9 + $0x10] sm:$0xff]
    %v206 = vld [vmem:[#allocation9 + $0x18] sm:$0xff]
    %v207 = vld [vmem:[%s1] sm:$0x3]
    %v208 = vld [vmem:[%s2] sm:$0x3]
    %v209 = vld [vmem:[#allocation2] sm:$0x1]
    %v210 = vld [vmem:[#allocation2 + $0x8] sm:$0x1]
    %v212 = vrot.slane %v210, 7
    %vm214 = vcmask 1040384
    %v215 = vsel %vm214, %v209, %v212
    %vm216 = vcmask 261120
    %v218 = vsel %vm216, %v207, 0
    %220 = vmatprep.subr.mxu0 0.0
    %221 = vmatpush1.msra.mxu0 %v203
    %222 = vmatprep.subr.mxu0 0.0
    %223 = vmatpush1.msra.mxu0 %v204
    %224 = vmatprep.subr.mxu0 0.0
    %225 = vmatpush1.msra.mxu0 %v205
    %226 = vmatprep.subr.mxu0 0.0
    %227 = vmatpush1.msra.mxu0 %v206
    %228 = vmatprep.subr.mxu0 0.0
    %229 = vmatpush1.msra.mxu0 0.0
    %230 = vmatprep.subr.mxu0 0.0
    %231 = vmatpush1.msra.mxu0 0.0
    %232 = vmatprep.subr.mxu0 0.0
    %233 = vmatpush1.msra.mxu0 0.0
    %234 = vmatprep.subr.mxu0 0.0
    %235 = vmatpush1.msra.mxu0 0.0
    %236 = vmatprep.subr.mxu0 0.0
    %237 = vmatpush1.msra.mxu0 0.0
    %238 = vmatprep.subr.mxu0 0.0
    %239 = vmatpush1.msra.mxu0 0.0
    %240 = vmatprep.subr.mxu0 0.0
    %241 = vmatpush1.msra.mxu0 0.0
    %242 = vmatprep.subr.mxu0 0.0
    %243 = vmatpush1.msra.mxu0 0.0
    %244 = vmatprep.subr.mxu0 0.0
    %245 = vmatpush1.msra.mxu0 0.0
    %246 = vmatprep.subr.mxu0 0.0
    %247 = vmatpush1.msra.mxu0 0.0
    %248 = vmatprep.subr.mxu0 0.0
    %249 = vmatpush1.msra.mxu0 0.0
    %250 = vmatprep.subr.mxu0 0.0
    %251 = vmatpush1.msra.mxu0 0.0
    %252 = vmatprep.subr.mxu0 0.0
    %253 = vmatpush1.msra.mxu0 0.0
    %254 = vmatprep.subr.mxu0 0.0
    %255 = vmatpush1.msra.mxu0 0.0
    %256 = vmatprep.subr.mxu0 0.0
    %257 = vmatpush1.msra.mxu0 0.0
    %258 = vmatprep.subr.mxu0 0.0
    %259 = vmatpush1.msra.mxu0 0.0
    %260 = vmatprep.subr.mxu0 0.0
    %261 = vmatpush1.msra.mxu0 0.0
    %262 = vmatprep.subr.mxu0 0.0
    %263 = vmatpush1.msra.mxu0 0.0
    %264 = vmatprep.subr.mxu0 0.0
    %265 = vmatpush1.msra.mxu0 0.0
    %266 = vmatprep.subr.mxu0 0.0
    %267 = vmatpush1.msra.mxu0 0.0
    %268 = vmatprep.subr.mxu0 0.0
    %269 = vmatpush1.msra.mxu0 0.0
    %270 = vmatprep.subr.mxu0 0.0
    %271 = vmatpush1.msra.mxu0 0.0
    %272 = vmatprep.subr.mxu0 0.0
    %273 = vmatpush1.msra.mxu0 0.0
    %274 = vmatprep.subr.mxu0 0.0
    %275 = vmatpush1.msra.mxu0 0.0
    %276 = vmatprep.subr.mxu0 0.0
    %277 = vmatpush1.msra.mxu0 0.0
    %278 = vmatprep.subr.mxu0 0.0
    %279 = vmatpush1.msra.mxu0 0.0
    %280 = vmatprep.subr.mxu0 0.0
    %281 = vmatpush1.msra.mxu0 0.0
    %282 = vmatprep.subr.mxu0 0.0
    %283 = vmatpush1.msra.mxu0 0.0
    %284 = vmatprep.mubr.f32.mxu0 0.0
    %285 = vmatmul.mubr.f32.gmra.mrb[0].mxu0 %v218
    %v286 = vpop.f32.mrb[0].mxu0
    %v287 = vadd.f32 0.0, %v286
    %v288 = vpop.f32.mrb[0].mxu0
    %289 = vdwg.mxu0
    %v290 = vadd.f32 %v215, %v287
    %v291 = vxor.u32 %v290, 2147483648
    %v292 = vmul.f32 %v291, 1.442695
    %v293 = vpow.pop %v292
    %v294 = vadd.f32 %v293, 1.0
    %v295 = vrcp.pop %v294
    %v296 = vmul.f32 1.0, %v295
    %v297 = vtanh.pop %v290
    %299 = vrot.lane.b32.xlu0 %v208, 32
    %v300 = vpop.permute.xlu0 %299
    %v302 = vmul.f32 %v296, %v300
    %304 = vrot.lane.b32.xlu0 %v297, 64
    %v305 = vpop.permute.xlu0 %304
    %v307 = vmul.f32 %v296, %v305
    %309 = vrot.lane.b32.xlu0 %v307, 32
    %v310 = vpop.permute.xlu0 %309
    %v312 = vadd.f32 %v302, %v310
    %v313 = vtanh.pop %v312
    %315 = vrot.lane.b32.xlu0 %v313, 64
    %v316 = vpop.permute.xlu0 %315
    %v318 = vmul.f32 %v296, %v316
    %320 = vrot.lane.b32.xlu0 %v318, 32
    %v321 = vpop.permute.xlu0 %320
    %vm323 = vcmask 254976
    %324 = vst.msk [vmem:[#allocation3] sm:$0x3] %vm323, %v321
    %v325 = vld [vmem:[#allocation2 + $0x1] sm:$0x1]
    %v326 = vld [vmem:[#allocation2 + $0x9] sm:$0x1]
    %v328 = vrot.slane %v326, 7
    %v330 = vsel %vm214, %v325, %v328
    %v331 = vsel %vm216, %v321, 0
    %333 = vmatprep.subr.mxu0 0.0
    %334 = vmatpush1.msra.mxu0 %v203
    %335 = vmatprep.subr.mxu0 0.0
    %336 = vmatpush1.msra.mxu0 %v204
    %337 = vmatprep.subr.mxu0 0.0
    %338 = vmatpush1.msra.mxu0 %v205
    %339 = vmatprep.subr.mxu0 0.0
    %340 = vmatpush1.msra.mxu0 %v206
    %341 = vmatprep.subr.mxu0 0.0
    %342 = vmatpush1.msra.mxu0 0.0
    %343 = vmatprep.subr.mxu0 0.0
    %344 = vmatpush1.msra.mxu0 0.0
    %345 = vmatprep.subr.mxu0 0.0
    %346 = vmatpush1.msra.mxu0 0.0
    %347 = vmatprep.subr.mxu0 0.0
    %348 = vmatpush1.msra.mxu0 0.0
    %349 = vmatprep.subr.mxu0 0.0
    %350 = vmatpush1.msra.mxu0 0.0
    %351 = vmatprep.subr.mxu0 0.0
    %352 = vmatpush1.msra.mxu0 0.0
    %353 = vmatprep.subr.mxu0 0.0
    %354 = vmatpush1.msra.mxu0 0.0
    %355 = vmatprep.subr.mxu0 0.0
    %356 = vmatpush1.msra.mxu0 0.0
    %357 = vmatprep.subr.mxu0 0.0
    %358 = vmatpush1.msra.mxu0 0.0
    %359 = vmatprep.subr.mxu0 0.0
    %360 = vmatpush1.msra.mxu0 0.0
    %361 = vmatprep.subr.mxu0 0.0
    %362 = vmatpush1.msra.mxu0 0.0
    %363 = vmatprep.subr.mxu0 0.0
    %364 = vmatpush1.msra.mxu0 0.0
    %365 = vmatprep.subr.mxu0 0.0
    %366 = vmatpush1.msra.mxu0 0.0
    %367 = vmatprep.subr.mxu0 0.0
    %368 = vmatpush1.msra.mxu0 0.0
    %369 = vmatprep.subr.mxu0 0.0
    %370 = vmatpush1.msra.mxu0 0.0
    %371 = vmatprep.subr.mxu0 0.0
    %372 = vmatpush1.msra.mxu0 0.0
    %373 = vmatprep.subr.mxu0 0.0
    %374 = vmatpush1.msra.mxu0 0.0
    %375 = vmatprep.subr.mxu0 0.0
    %376 = vmatpush1.msra.mxu0 0.0
    %377 = vmatprep.subr.mxu0 0.0
    %378 = vmatpush1.msra.mxu0 0.0
    %379 = vmatprep.subr.mxu0 0.0
    %380 = vmatpush1.msra.mxu0 0.0
    %381 = vmatprep.subr.mxu0 0.0
    %382 = vmatpush1.msra.mxu0 0.0
    %383 = vmatprep.subr.mxu0 0.0
    %384 = vmatpush1.msra.mxu0 0.0
    %385 = vmatprep.subr.mxu0 0.0
    %386 = vmatpush1.msra.mxu0 0.0
    %387 = vmatprep.subr.mxu0 0.0
    %388 = vmatpush1.msra.mxu0 0.0
    %389 = vmatprep.subr.mxu0 0.0
    %390 = vmatpush1.msra.mxu0 0.0
    %391 = vmatprep.subr.mxu0 0.0
    %392 = vmatpush1.msra.mxu0 0.0
    %393 = vmatprep.subr.mxu0 0.0
    %394 = vmatpush1.msra.mxu0 0.0
    %395 = vmatprep.subr.mxu0 0.0
    %396 = vmatpush1.msra.mxu0 0.0
    %397 = vmatprep.mubr.f32.mxu0 0.0
    %398 = vmatmul.mubr.f32.gmra.mrb[0].mxu0 %v331
    %v399 = vpop.f32.mrb[0].mxu0
    %v400 = vadd.f32 0.0, %v399
    %v401 = vpop.f32.mrb[0].mxu0
    %402 = vdwg.mxu0
    %v403 = vadd.f32 %v330, %v400
    %v404 = vxor.u32 %v403, 2147483648
    %v405 = vmul.f32 %v404, 1.442695
    %v406 = vpow.pop %v405
    %v407 = vadd.f32 %v406, 1.0
    %v408 = vrcp.pop %v407
    %v409 = vmul.f32 1.0, %v408
    %v410 = vtanh.pop %v403
    %v411 = vmul.f32 %v409, %v312
    %413 = vrot.lane.b32.xlu0 %v410, 64
    %v414 = vpop.permute.xlu0 %413
    %v416 = vmul.f32 %v409, %v414
    %418 = vrot.lane.b32.xlu0 %v416, 32
    %v419 = vpop.permute.xlu0 %418
    %v421 = vadd.f32 %v411, %v419
    %v422 = vtanh.pop %v421
    %424 = vrot.lane.b32.xlu0 %v422, 64
    %v425 = vpop.permute.xlu0 %424
    %v427 = vmul.f32 %v409, %v425
    %429 = vrot.lane.b32.xlu0 %v427, 32
    %v430 = vpop.permute.xlu0 %429
    %432 = vst.msk [vmem:[#allocation3 + $0x2] sm:$0x3] %vm323, %v430
    %v433 = vld [vmem:[#allocation2 + $0x2] sm:$0x1]
    %v434 = vld [vmem:[#allocation2 + $0xa] sm:$0x1]
    %v436 = vrot.slane %v434, 7
    %v438 = vsel %vm214, %v433, %v436
    %v439 = vsel %vm216, %v430, 0
    %441 = vmatprep.subr.mxu0 0.0
    %442 = vmatpush1.msra.mxu0 %v203
    %443 = vmatprep.subr.mxu0 0.0
    %444 = vmatpush1.msra.mxu0 %v204
    %445 = vmatprep.subr.mxu0 0.0
    %446 = vmatpush1.msra.mxu0 %v205
    %447 = vmatprep.subr.mxu0 0.0
    %448 = vmatpush1.msra.mxu0 %v206
    %449 = vmatprep.subr.mxu0 0.0
    %450 = vmatpush1.msra.mxu0 0.0
    %451 = vmatprep.subr.mxu0 0.0
    %452 = vmatpush1.msra.mxu0 0.0
    %453 = vmatprep.subr.mxu0 0.0
    %454 = vmatpush1.msra.mxu0 0.0
    %455 = vmatprep.subr.mxu0 0.0
    %456 = vmatpush1.msra.mxu0 0.0
    %457 = vmatprep.subr.mxu0 0.0
    %458 = vmatpush1.msra.mxu0 0.0
    %459 = vmatprep.subr.mxu0 0.0
    %460 = vmatpush1.msra.mxu0 0.0
    %461 = vmatprep.subr.mxu0 0.0
    %462 = vmatpush1.msra.mxu0 0.0
    %463 = vmatprep.subr.mxu0 0.0
    %464 = vmatpush1.msra.mxu0 0.0
    %465 = vmatprep.subr.mxu0 0.0
    %466 = vmatpush1.msra.mxu0 0.0
    %467 = vmatprep.subr.mxu0 0.0
    %468 = vmatpush1.msra.mxu0 0.0
    %469 = vmatprep.subr.mxu0 0.0
    %470 = vmatpush1.msra.mxu0 0.0
    %471 = vmatprep.subr.mxu0 0.0
    %472 = vmatpush1.msra.mxu0 0.0
    %473 = vmatprep.subr.mxu0 0.0
    %474 = vmatpush1.msra.mxu0 0.0
    %475 = vmatprep.subr.mxu0 0.0
    %476 = vmatpush1.msra.mxu0 0.0
    %477 = vmatprep.subr.mxu0 0.0
    %478 = vmatpush1.msra.mxu0 0.0
    %479 = vmatprep.subr.mxu0 0.0
    %480 = vmatpush1.msra.mxu0 0.0
    %481 = vmatprep.subr.mxu0 0.0
    %482 = vmatpush1.msra.mxu0 0.0
    %483 = vmatprep.subr.mxu0 0.0
    %484 = vmatpush1.msra.mxu0 0.0
    %485 = vmatprep.subr.mxu0 0.0
    %486 = vmatpush1.msra.mxu0 0.0
    %487 = vmatprep.subr.mxu0 0.0
    %488 = vmatpush1.msra.mxu0 0.0
    %489 = vmatprep.subr.mxu0 0.0
    %490 = vmatpush1.msra.mxu0 0.0
    %491 = vmatprep.subr.mxu0 0.0
    %492 = vmatpush1.msra.mxu0 0.0
    %493 = vmatprep.subr.mxu0 0.0
    %494 = vmatpush1.msra.mxu0 0.0
    %495 = vmatprep.subr.mxu0 0.0
    %496 = vmatpush1.msra.mxu0 0.0
    %497 = vmatprep.subr.mxu0 0.0
    %498 = vmatpush1.msra.mxu0 0.0
    %499 = vmatprep.subr.mxu0 0.0
    %500 = vmatpush1.msra.mxu0 0.0
    %501 = vmatprep.subr.mxu0 0.0
    %502 = vmatpush1.msra.mxu0 0.0
    %503 = vmatprep.subr.mxu0 0.0
    %504 = vmatpush1.msra.mxu0 0.0
    %505 = vmatprep.mubr.f32.mxu0 0.0
    %506 = vmatmul.mubr.f32.gmra.mrb[0].mxu0 %v439
    %v507 = vpop.f32.mrb[0].mxu0
    %v508 = vadd.f32 0.0, %v507
    %v509 = vpop.f32.mrb[0].mxu0
    %510 = vdwg.mxu0
    %v511 = vadd.f32 %v438, %v508
    %v512 = vxor.u32 %v511, 2147483648
    %v513 = vmul.f32 %v512, 1.442695
    %v514 = vpow.pop %v513
    %v515 = vadd.f32 %v514, 1.0
    %v516 = vrcp.pop %v515
    %v517 = vmul.f32 1.0, %v516
    %v518 = vtanh.pop %v511
    %v519 = vmul.f32 %v517, %v421
    %521 = vrot.lane.b32.xlu0 %v518, 64
    %v522 = vpop.permute.xlu0 %521
    %v524 = vmul.f32 %v517, %v522
    %526 = vrot.lane.b32.xlu0 %v524, 32
    %v527 = vpop.permute.xlu0 %526
    %v529 = vadd.f32 %v519, %v527
    %v530 = vtanh.pop %v529
    %532 = vrot.lane.b32.xlu0 %v530, 64
    %v533 = vpop.permute.xlu0 %532
    %v535 = vmul.f32 %v517, %v533
    %537 = vrot.lane.b32.xlu0 %v535, 32
    %v538 = vpop.permute.xlu0 %537
    %540 = vst.msk [vmem:[#allocation3 + $0x4] sm:$0x3] %vm323, %v538
    %v541 = vld [vmem:[#allocation2 + $0x3] sm:$0x1]
    %v542 = vld [vmem:[#allocation2 + $0xb] sm:$0x1]
    %v544 = vrot.slane %v542, 7
    %v546 = vsel %vm214, %v541, %v544
    %v547 = vsel %vm216, %v538, 0
    %549 = vmatprep.subr.mxu0 0.0
    %550 = vmatpush1.msra.mxu0 %v203
    %551 = vmatprep.subr.mxu0 0.0
    %552 = vmatpush1.msra.mxu0 %v204
    %553 = vmatprep.subr.mxu0 0.0
    %554 = vmatpush1.msra.mxu0 %v205
    %555 = vmatprep.subr.mxu0 0.0
    %556 = vmatpush1.msra.mxu0 %v206
    %557 = vmatprep.subr.mxu0 0.0
    %558 = vmatpush1.msra.mxu0 0.0
    %559 = vmatprep.subr.mxu0 0.0
    %560 = vmatpush1.msra.mxu0 0.0
    %561 = vmatprep.subr.mxu0 0.0
    %562 = vmatpush1.msra.mxu0 0.0
    %563 = vmatprep.subr.mxu0 0.0
    %564 = vmatpush1.msra.mxu0 0.0
    %565 = vmatprep.subr.mxu0 0.0
    %566 = vmatpush1.msra.mxu0 0.0
    %567 = vmatprep.subr.mxu0 0.0
    %568 = vmatpush1.msra.mxu0 0.0
    %569 = vmatprep.subr.mxu0 0.0
    %570 = vmatpush1.msra.mxu0 0.0
    %571 = vmatprep.subr.mxu0 0.0
    %572 = vmatpush1.msra.mxu0 0.0
    %573 = vmatprep.subr.mxu0 0.0
    %574 = vmatpush1.msra.mxu0 0.0
    %575 = vmatprep.subr.mxu0 0.0
    %576 = vmatpush1.msra.mxu0 0.0
    %577 = vmatprep.subr.mxu0 0.0
    %578 = vmatpush1.msra.mxu0 0.0
    %579 = vmatprep.subr.mxu0 0.0
    %580 = vmatpush1.msra.mxu0 0.0
    %581 = vmatprep.subr.mxu0 0.0
    %582 = vmatpush1.msra.mxu0 0.0
    %583 = vmatprep.subr.mxu0 0.0
    %584 = vmatpush1.msra.mxu0 0.0
    %585 = vmatprep.subr.mxu0 0.0
    %586 = vmatpush1.msra.mxu0 0.0
    %587 = vmatprep.subr.mxu0 0.0
    %588 = vmatpush1.msra.mxu0 0.0
    %589 = vmatprep.subr.mxu0 0.0
    %590 = vmatpush1.msra.mxu0 0.0
    %591 = vmatprep.subr.mxu0 0.0
    %592 = vmatpush1.msra.mxu0 0.0
    %593 = vmatprep.subr.mxu0 0.0
    %594 = vmatpush1.msra.mxu0 0.0
    %595 = vmatprep.subr.mxu0 0.0
    %596 = vmatpush1.msra.mxu0 0.0
    %597 = vmatprep.subr.mxu0 0.0
    %598 = vmatpush1.msra.mxu0 0.0
    %599 = vmatprep.subr.mxu0 0.0
    %600 = vmatpush1.msra.mxu0 0.0
    %601 = vmatprep.subr.mxu0 0.0
    %602 = vmatpush1.msra.mxu0 0.0
    %603 = vmatprep.subr.mxu0 0.0
    %604 = vmatpush1.msra.mxu0 0.0
    %605 = vmatprep.subr.mxu0 0.0
    %606 = vmatpush1.msra.mxu0 0.0
    %607 = vmatprep.subr.mxu0 0.0
    %608 = vmatpush1.msra.mxu0 0.0
    %609 = vmatprep.subr.mxu0 0.0
    %610 = vmatpush1.msra.mxu0 0.0
    %611 = vmatprep.subr.mxu0 0.0
    %612 = vmatpush1.msra.mxu0 0.0
    %613 = vmatprep.mubr.f32.mxu0 0.0
    %614 = vmatmul.mubr.f32.gmra.mrb[0].mxu0 %v547
    %v615 = vpop.f32.mrb[0].mxu0
    %v616 = vadd.f32 0.0, %v615
    %v617 = vpop.f32.mrb[0].mxu0
    %618 = vdwg.mxu0
    %v619 = vadd.f32 %v546, %v616
    %v620 = vxor.u32 %v619, 2147483648
    %v621 = vmul.f32 %v620, 1.442695
    %v622 = vpow.pop %v621
    %v623 = vadd.f32 %v622, 1.0
    %v624 = vrcp.pop %v623
    %v625 = vmul.f32 1.0, %v624
    %v626 = vtanh.pop %v619
    %v627 = vmul.f32 %v625, %v529
    %629 = vrot.lane.b32.xlu0 %v626, 64
    %v630 = vpop.permute.xlu0 %629
    %v632 = vmul.f32 %v625, %v630
    %634 = vrot.lane.b32.xlu0 %v632, 32
    %v635 = vpop.permute.xlu0 %634
    %v637 = vadd.f32 %v627, %v635
    %v638 = vtanh.pop %v637
    %640 = vrot.lane.b32.xlu0 %v638, 64
    %v641 = vpop.permute.xlu0 %640
    %v643 = vmul.f32 %v625, %v641
    %645 = vrot.lane.b32.xlu0 %v643, 32
    %v646 = vpop.permute.xlu0 %645
    %648 = vst.msk [vmem:[#allocation3 + $0x6] sm:$0x3] %vm323, %v646
    %v649 = vld [vmem:[#allocation2 + $0x4] sm:$0x1]
    %v650 = vld [vmem:[#allocation2 + $0xc] sm:$0x1]
    %v652 = vrot.slane %v650, 7
    %v654 = vsel %vm214, %v649, %v652
    %v655 = vsel %vm216, %v646, 0
    %657 = vmatprep.subr.mxu0 0.0
    %658 = vmatpush1.msra.mxu0 %v203
    %659 = vmatprep.subr.mxu0 0.0
    %660 = vmatpush1.msra.mxu0 %v204
    %661 = vmatprep.subr.mxu0 0.0
    %662 = vmatpush1.msra.mxu0 %v205
    %663 = vmatprep.subr.mxu0 0.0
    %664 = vmatpush1.msra.mxu0 %v206
    %665 = vmatprep.subr.mxu0 0.0
    %666 = vmatpush1.msra.mxu0 0.0
    %667 = vmatprep.subr.mxu0 0.0
    %668 = vmatpush1.msra.mxu0 0.0
    %669 = vmatprep.subr.mxu0 0.0
    %670 = vmatpush1.msra.mxu0 0.0
    %671 = vmatprep.subr.mxu0 0.0
    %672 = vmatpush1.msra.mxu0 0.0
    %673 = vmatprep.subr.mxu0 0.0
    %674 = vmatpush1.msra.mxu0 0.0
    %675 = vmatprep.subr.mxu0 0.0
    %676 = vmatpush1.msra.mxu0 0.0
    %677 = vmatprep.subr.mxu0 0.0
    %678 = vmatpush1.msra.mxu0 0.0
    %679 = vmatprep.subr.mxu0 0.0
    %680 = vmatpush1.msra.mxu0 0.0
    %681 = vmatprep.subr.mxu0 0.0
    %682 = vmatpush1.msra.mxu0 0.0
    %683 = vmatprep.subr.mxu0 0.0
    %684 = vmatpush1.msra.mxu0 0.0
    %685 = vmatprep.subr.mxu0 0.0
    %686 = vmatpush1.msra.mxu0 0.0
    %687 = vmatprep.subr.mxu0 0.0
    %688 = vmatpush1.msra.mxu0 0.0
    %689 = vmatprep.subr.mxu0 0.0
    %690 = vmatpush1.msra.mxu0 0.0
    %691 = vmatprep.subr.mxu0 0.0
    %692 = vmatpush1.msra.mxu0 0.0
    %693 = vmatprep.subr.mxu0 0.0
    %694 = vmatpush1.msra.mxu0 0.0
    %695 = vmatprep.subr.mxu0 0.0
    %696 = vmatpush1.msra.mxu0 0.0
    %697 = vmatprep.subr.mxu0 0.0
    %698 = vmatpush1.msra.mxu0 0.0
    %699 = vmatprep.subr.mxu0 0.0
    %700 = vmatpush1.msra.mxu0 0.0
    %701 = vmatprep.subr.mxu0 0.0
    %702 = vmatpush1.msra.mxu0 0.0
    %703 = vmatprep.subr.mxu0 0.0
    %704 = vmatpush1.msra.mxu0 0.0
    %705 = vmatprep.subr.mxu0 0.0
    %706 = vmatpush1.msra.mxu0 0.0
    %707 = vmatprep.subr.mxu0 0.0
    %708 = vmatpush1.msra.mxu0 0.0
    %709 = vmatprep.subr.mxu0 0.0
    %710 = vmatpush1.msra.mxu0 0.0
    %711 = vmatprep.subr.mxu0 0.0
    %712 = vmatpush1.msra.mxu0 0.0
    %713 = vmatprep.subr.mxu0 0.0
    %714 = vmatpush1.msra.mxu0 0.0
    %715 = vmatprep.subr.mxu0 0.0
    %716 = vmatpush1.msra.mxu0 0.0
    %717 = vmatprep.subr.mxu0 0.0
    %718 = vmatpush1.msra.mxu0 0.0
    %719 = vmatprep.subr.mxu0 0.0
    %720 = vmatpush1.msra.mxu0 0.0
    %721 = vmatprep.mubr.f32.mxu0 0.0
    %722 = vmatmul.mubr.f32.gmra.mrb[0].mxu0 %v655
    %v723 = vpop.f32.mrb[0].mxu0
    %v724 = vadd.f32 0.0, %v723
    %v725 = vpop.f32.mrb[0].mxu0
    %726 = vdwg.mxu0
    %v727 = vadd.f32 %v654, %v724
    %v728 = vxor.u32 %v727, 2147483648
    %v729 = vmul.f32 %v728, 1.442695
    %v730 = vpow.pop %v729
    %v731 = vadd.f32 %v730, 1.0
    %v732 = vrcp.pop %v731
    %v733 = vmul.f32 1.0, %v732
    %v734 = vtanh.pop %v727
    %v735 = vmul.f32 %v733, %v637
    %737 = vrot.lane.b32.xlu0 %v734, 64
    %v738 = vpop.permute.xlu0 %737
    %v740 = vmul.f32 %v733, %v738
    %742 = vrot.lane.b32.xlu0 %v740, 32
    %v743 = vpop.permute.xlu0 %742
    %v745 = vadd.f32 %v735, %v743
    %v746 = vtanh.pop %v745
    %748 = vrot.lane.b32.xlu0 %v746, 64
    %v749 = vpop.permute.xlu0 %748
    %v751 = vmul.f32 %v733, %v749
    %753 = vrot.lane.b32.xlu0 %v751, 32
    %v754 = vpop.permute.xlu0 %753
    %756 = vst.msk [vmem:[#allocation3 + $0x8] sm:$0x3] %vm323, %v754
    %v757 = vld [vmem:[#allocation2 + $0x5] sm:$0x1]
    %v758 = vld [vmem:[#allocation2 + $0xd] sm:$0x1]
    %v760 = vrot.slane %v758, 7
    %v762 = vsel %vm214, %v757, %v760
    %v763 = vsel %vm216, %v754, 0
    %765 = vmatprep.subr.mxu0 0.0
    %766 = vmatpush1.msra.mxu0 %v203
    %767 = vmatprep.subr.mxu0 0.0
    %768 = vmatpush1.msra.mxu0 %v204
    %769 = vmatprep.subr.mxu0 0.0
    %770 = vmatpush1.msra.mxu0 %v205
    %771 = vmatprep.subr.mxu0 0.0
    %772 = vmatpush1.msra.mxu0 %v206
    %773 = vmatprep.subr.mxu0 0.0
    %774 = vmatpush1.msra.mxu0 0.0
    %775 = vmatprep.subr.mxu0 0.0
    %776 = vmatpush1.msra.mxu0 0.0
    %777 = vmatprep.subr.mxu0 0.0
    %778 = vmatpush1.msra.mxu0 0.0
    %779 = vmatprep.subr.mxu0 0.0
    %780 = vmatpush1.msra.mxu0 0.0
    %781 = vmatprep.subr.mxu0 0.0
    %782 = vmatpush1.msra.mxu0 0.0
    %783 = vmatprep.subr.mxu0 0.0
    %784 = vmatpush1.msra.mxu0 0.0
    %785 = vmatprep.subr.mxu0 0.0
    %786 = vmatpush1.msra.mxu0 0.0
    %787 = vmatprep.subr.mxu0 0.0
    %788 = vmatpush1.msra.mxu0 0.0
    %789 = vmatprep.subr.mxu0 0.0
    %790 = vmatpush1.msra.mxu0 0.0
    %791 = vmatprep.subr.mxu0 0.0
    %792 = vmatpush1.msra.mxu0 0.0
    %793 = vmatprep.subr.mxu0 0.0
    %794 = vmatpush1.msra.mxu0 0.0
    %795 = vmatprep.subr.mxu0 0.0
    %796 = vmatpush1.msra.mxu0 0.0
    %797 = vmatprep.subr.mxu0 0.0
    %798 = vmatpush1.msra.mxu0 0.0
    %799 = vmatprep.subr.mxu0 0.0
    %800 = vmatpush1.msra.mxu0 0.0
    %801 = vmatprep.subr.mxu0 0.0
    %802 = vmatpush1.msra.mxu0 0.0
    %803 = vmatprep.subr.mxu0 0.0
    %804 = vmatpush1.msra.mxu0 0.0
    %805 = vmatprep.subr.mxu0 0.0
    %806 = vmatpush1.msra.mxu0 0.0
    %807 = vmatprep.subr.mxu0 0.0
    %808 = vmatpush1.msra.mxu0 0.0
    %809 = vmatprep.subr.mxu0 0.0
    %810 = vmatpush1.msra.mxu0 0.0
    %811 = vmatprep.subr.mxu0 0.0
    %812 = vmatpush1.msra.mxu0 0.0
    %813 = vmatprep.subr.mxu0 0.0
    %814 = vmatpush1.msra.mxu0 0.0
    %815 = vmatprep.subr.mxu0 0.0
    %816 = vmatpush1.msra.mxu0 0.0
    %817 = vmatprep.subr.mxu0 0.0
    %818 = vmatpush1.msra.mxu0 0.0
    %819 = vmatprep.subr.mxu0 0.0
    %820 = vmatpush1.msra.mxu0 0.0
    %821 = vmatprep.subr.mxu0 0.0
    %822 = vmatpush1.msra.mxu0 0.0
    %823 = vmatprep.subr.mxu0 0.0
    %824 = vmatpush1.msra.mxu0 0.0
    %825 = vmatprep.subr.mxu0 0.0
    %826 = vmatpush1.msra.mxu0 0.0
    %827 = vmatprep.subr.mxu0 0.0
    %828 = vmatpush1.msra.mxu0 0.0
    %829 = vmatprep.mubr.f32.mxu0 0.0
    %830 = vmatmul.mubr.f32.gmra.mrb[0].mxu0 %v763
    %v831 = vpop.f32.mrb[0].mxu0
    %v832 = vadd.f32 0.0, %v831
    %v833 = vpop.f32.mrb[0].mxu0
    %834 = vdwg.mxu0
    %v835 = vadd.f32 %v762, %v832
    %v836 = vxor.u32 %v835, 2147483648
    %v837 = vmul.f32 %v836, 1.442695
    %v838 = vpow.pop %v837
    %v839 = vadd.f32 %v838, 1.0
    %v840 = vrcp.pop %v839
    %v841 = vmul.f32 1.0, %v840
    %v842 = vtanh.pop %v835
    %v843 = vmul.f32 %v841, %v745
    %845 = vrot.lane.b32.xlu0 %v842, 64
    %v846 = vpop.permute.xlu0 %845
    %v848 = vmul.f32 %v841, %v846
    %850 = vrot.lane.b32.xlu0 %v848, 32
    %v851 = vpop.permute.xlu0 %850
    %v853 = vadd.f32 %v843, %v851
    %v854 = vtanh.pop %v853
    %856 = vrot.lane.b32.xlu0 %v854, 64
    %v857 = vpop.permute.xlu0 %856
    %v859 = vmul.f32 %v841, %v857
    %861 = vrot.lane.b32.xlu0 %v859, 32
    %v862 = vpop.permute.xlu0 %861
    %864 = vst.msk [vmem:[#allocation3 + $0xa] sm:$0x3] %vm323, %v862
    %v865 = vld [vmem:[#allocation2 + $0x6] sm:$0x1]
    %v866 = vld [vmem:[#allocation2 + $0xe] sm:$0x1]
    %v868 = vrot.slane %v866, 7
    %v870 = vsel %vm214, %v865, %v868
    %v871 = vsel %vm216, %v862, 0
    %873 = vmatprep.subr.mxu0 0.0
    %874 = vmatpush1.msra.mxu0 %v203
    %875 = vmatprep.subr.mxu0 0.0
    %876 = vmatpush1.msra.mxu0 %v204
    %877 = vmatprep.subr.mxu0 0.0
    %878 = vmatpush1.msra.mxu0 %v205
    %879 = vmatprep.subr.mxu0 0.0
    %880 = vmatpush1.msra.mxu0 %v206
    %881 = vmatprep.subr.mxu0 0.0
    %882 = vmatpush1.msra.mxu0 0.0
    %883 = vmatprep.subr.mxu0 0.0
    %884 = vmatpush1.msra.mxu0 0.0
    %885 = vmatprep.subr.mxu0 0.0
    %886 = vmatpush1.msra.mxu0 0.0
    %887 = vmatprep.subr.mxu0 0.0
    %888 = vmatpush1.msra.mxu0 0.0
    %889 = vmatprep.subr.mxu0 0.0
    %890 = vmatpush1.msra.mxu0 0.0
    %891 = vmatprep.subr.mxu0 0.0
    %892 = vmatpush1.msra.mxu0 0.0
    %893 = vmatprep.subr.mxu0 0.0
    %894 = vmatpush1.msra.mxu0 0.0
    %895 = vmatprep.subr.mxu0 0.0
    %896 = vmatpush1.msra.mxu0 0.0
    %897 = vmatprep.subr.mxu0 0.0
    %898 = vmatpush1.msra.mxu0 0.0
    %899 = vmatprep.subr.mxu0 0.0
    %900 = vmatpush1.msra.mxu0 0.0
    %901 = vmatprep.subr.mxu0 0.0
    %902 = vmatpush1.msra.mxu0 0.0
    %903 = vmatprep.subr.mxu0 0.0
    %904 = vmatpush1.msra.mxu0 0.0
    %905 = vmatprep.subr.mxu0 0.0
    %906 = vmatpush1.msra.mxu0 0.0
    %907 = vmatprep.subr.mxu0 0.0
    %908 = vmatpush1.msra.mxu0 0.0
    %909 = vmatprep.subr.mxu0 0.0
    %910 = vmatpush1.msra.mxu0 0.0
    %911 = vmatprep.subr.mxu0 0.0
    %912 = vmatpush1.msra.mxu0 0.0
    %913 = vmatprep.subr.mxu0 0.0
    %914 = vmatpush1.msra.mxu0 0.0
    %915 = vmatprep.subr.mxu0 0.0
    %916 = vmatpush1.msra.mxu0 0.0
    %917 = vmatprep.subr.mxu0 0.0
    %918 = vmatpush1.msra.mxu0 0.0
    %919 = vmatprep.subr.mxu0 0.0
    %920 = vmatpush1.msra.mxu0 0.0
    %921 = vmatprep.subr.mxu0 0.0
    %922 = vmatpush1.msra.mxu0 0.0
    %923 = vmatprep.subr.mxu0 0.0
    %924 = vmatpush1.msra.mxu0 0.0
    %925 = vmatprep.subr.mxu0 0.0
    %926 = vmatpush1.msra.mxu0 0.0
    %927 = vmatprep.subr.mxu0 0.0
    %928 = vmatpush1.msra.mxu0 0.0
    %929 = vmatprep.subr.mxu0 0.0
    %930 = vmatpush1.msra.mxu0 0.0
    %931 = vmatprep.subr.mxu0 0.0
    %932 = vmatpush1.msra.mxu0 0.0
    %933 = vmatprep.subr.mxu0 0.0
    %934 = vmatpush1.msra.mxu0 0.0
    %935 = vmatprep.subr.mxu0 0.0
    %936 = vmatpush1.msra.mxu0 0.0
    %937 = vmatprep.mubr.f32.mxu0 0.0
    %938 = vmatmul.mubr.f32.gmra.mrb[0].mxu0 %v871
    %v939 = vpop.f32.mrb[0].mxu0
    %v940 = vadd.f32 0.0, %v939
    %v941 = vpop.f32.mrb[0].mxu0
    %942 = vdwg.mxu0
    %v943 = vadd.f32 %v870, %v940
    %v944 = vxor.u32 %v943, 2147483648
    %v945 = vmul.f32 %v944, 1.442695
    %v946 = vpow.pop %v945
    %v947 = vadd.f32 %v946, 1.0
    %v948 = vrcp.pop %v947
    %v949 = vmul.f32 1.0, %v948
    %v950 = vtanh.pop %v943
    %v951 = vmul.f32 %v949, %v853
    %953 = vrot.lane.b32.xlu0 %v950, 64
    %v954 = vpop.permute.xlu0 %953
    %v956 = vmul.f32 %v949, %v954
    %958 = vrot.lane.b32.xlu0 %v956, 32
    %v959 = vpop.permute.xlu0 %958
    %v961 = vadd.f32 %v951, %v959
    %v962 = vtanh.pop %v961
    %964 = vrot.lane.b32.xlu0 %v962, 64
    %v965 = vpop.permute.xlu0 %964
    %v967 = vmul.f32 %v949, %v965
    %969 = vrot.lane.b32.xlu0 %v967, 32
    %v970 = vpop.permute.xlu0 %969
    %972 = vst.msk [vmem:[#allocation3 + $0xc] sm:$0x3] %vm323, %v970
    %v973 = vld [vmem:[#allocation2 + $0x7] sm:$0x1]
    %v974 = vld [vmem:[#allocation2 + $0xf] sm:$0x1]
    %v976 = vrot.slane %v974, 7
    %v978 = vsel %vm214, %v973, %v976
    %v979 = vsel %vm216, %v970, 0
    %981 = vmatprep.subr.mxu0 0.0
    %982 = vmatpush1.msra.mxu0 %v203
    %983 = vmatprep.subr.mxu0 0.0
    %984 = vmatpush1.msra.mxu0 %v204
    %985 = vmatprep.subr.mxu0 0.0
    %986 = vmatpush1.msra.mxu0 %v205
    %987 = vmatprep.subr.mxu0 0.0
    %988 = vmatpush1.msra.mxu0 %v206
    %989 = vmatprep.subr.mxu0 0.0
    %990 = vmatpush1.msra.mxu0 0.0
    %991 = vmatprep.subr.mxu0 0.0
    %992 = vmatpush1.msra.mxu0 0.0
    %993 = vmatprep.subr.mxu0 0.0
    %994 = vmatpush1.msra.mxu0 0.0
    %995 = vmatprep.subr.mxu0 0.0
    %996 = vmatpush1.msra.mxu0 0.0
    %997 = vmatprep.subr.mxu0 0.0
    %998 = vmatpush1.msra.mxu0 0.0
    %999 = vmatprep.subr.mxu0 0.0
    %1000 = vmatpush1.msra.mxu0 0.0
    %1001 = vmatprep.subr.mxu0 0.0
    %1002 = vmatpush1.msra.mxu0 0.0
    %1003 = vmatprep.subr.mxu0 0.0
    %1004 = vmatpush1.msra.mxu0 0.0
    %1005 = vmatprep.subr.mxu0 0.0
    %1006 = vmatpush1.msra.mxu0 0.0
    %1007 = vmatprep.subr.mxu0 0.0
    %1008 = vmatpush1.msra.mxu0 0.0
    %1009 = vmatprep.subr.mxu0 0.0
    %1010 = vmatpush1.msra.mxu0 0.0
    %1011 = vmatprep.subr.mxu0 0.0
    %1012 = vmatpush1.msra.mxu0 0.0
    %1013 = vmatprep.subr.mxu0 0.0
    %1014 = vmatpush1.msra.mxu0 0.0
    %1015 = vmatprep.subr.mxu0 0.0
    %1016 = vmatpush1.msra.mxu0 0.0
    %1017 = vmatprep.subr.mxu0 0.0
    %1018 = vmatpush1.msra.mxu0 0.0
    %1019 = vmatprep.subr.mxu0 0.0
    %1020 = vmatpush1.msra.mxu0 0.0
    %1021 = vmatprep.subr.mxu0 0.0
    %1022 = vmatpush1.msra.mxu0 0.0
    %1023 = vmatprep.subr.mxu0 0.0
    %1024 = vmatpush1.msra.mxu0 0.0
    %1025 = vmatprep.subr.mxu0 0.0
    %1026 = vmatpush1.msra.mxu0 0.0
    %1027 = vmatprep.subr.mxu0 0.0
    %1028 = vmatpush1.msra.mxu0 0.0
    %1029 = vmatprep.subr.mxu0 0.0
    %1030 = vmatpush1.msra.mxu0 0.0
    %1031 = vmatprep.subr.mxu0 0.0
    %1032 = vmatpush1.msra.mxu0 0.0
    %1033 = vmatprep.subr.mxu0 0.0
    %1034 = vmatpush1.msra.mxu0 0.0
    %1035 = vmatprep.subr.mxu0 0.0
    %1036 = vmatpush1.msra.mxu0 0.0
    %1037 = vmatprep.subr.mxu0 0.0
    %1038 = vmatpush1.msra.mxu0 0.0
    %1039 = vmatprep.subr.mxu0 0.0
    %1040 = vmatpush1.msra.mxu0 0.0
    %1041 = vmatprep.subr.mxu0 0.0
    %1042 = vmatpush1.msra.mxu0 0.0
    %1043 = vmatprep.subr.mxu0 0.0
    %1044 = vmatpush1.msra.mxu0 0.0
    %1045 = vmatprep.mubr.f32.mxu0 0.0
    %1046 = vmatmul.mubr.f32.gmra.mrb[0].mxu0 %v979
    %v1047 = vpop.f32.mrb[0].mxu0
    %v1048 = vadd.f32 0.0, %v1047
    %v1049 = vpop.f32.mrb[0].mxu0
    %1050 = vdwg.mxu0
    %v1051 = vadd.f32 %v978, %v1048
    %v1052 = vxor.u32 %v1051, 2147483648
    %v1053 = vmul.f32 %v1052, 1.442695
    %v1054 = vpow.pop %v1053
    %v1055 = vadd.f32 %v1054, 1.0
    %v1056 = vrcp.pop %v1055
    %v1057 = vmul.f32 1.0, %v1056
    %v1058 = vtanh.pop %v1051
    %v1059 = vmul.f32 %v1057, %v961
    %1061 = vrot.lane.b32.xlu0 %v1058, 64
    %v1062 = vpop.permute.xlu0 %1061
    %v1064 = vmul.f32 %v1057, %v1062
    %1066 = vrot.lane.b32.xlu0 %v1064, 32
    %v1067 = vpop.permute.xlu0 %1066
    %v1069 = vadd.f32 %v1059, %v1067
    %v1070 = vtanh.pop %v1069
    %1072 = vrot.lane.b32.xlu0 %v1070, 64
    %v1073 = vpop.permute.xlu0 %1072
    %v1075 = vmul.f32 %v1057, %v1073
    %1077 = vrot.lane.b32.xlu0 %v1075, 32
    %v1078 = vpop.permute.xlu0 %1077
    %1080 = vst.msk [vmem:[#allocation3 + $0xe] sm:$0x3] %vm323, %v1078
    %1081 = vst.msk [vmem:[#allocation14] sm:$0x3] %vm323, %v1078
    %1083 = vrot.lane.b32.xlu0 %v1069, 96
    %v1084 = vpop.permute.xlu0 %1083
    %1086 = vst.msk [vmem:[#allocation16] sm:$0x3] %vm323, %v1084
    %v1087 = vld [vmem:[#allocation3] sm:$0xff]
    %v1088 = vld [vmem:[#allocation3 + $0x8] sm:$0xff]
    %v1089 = vld [vmem:[#allocation10] sm:$0xff]
    %v1090 = vld [vmem:[#allocation10 + $0x8] sm:$0xff]
    %v1091 = vld [vmem:[#allocation10 + $0x10] sm:$0xff]
    %v1092 = vld [vmem:[#allocation10 + $0x18] sm:$0xff]
    %v1093 = vld [vmem:[%s7] sm:$0x1]
    %v1095 = vlaneseq
    %v1096 = vshrl.u32 %v1095, 7
    %v1097 = vsub.s32 0, %v1096
    %v1098 = vrot.slane %v1093, %v1097
    %v1101 = vsel %vm216, %v1087, 0
    %v1104 = vsel %vm216, %v1088, 0
    %1106 = vmatprep.subr.mxu0 0.0
    %1107 = vmatpush1.msra.mxu0 %v1089
    %1108 = vmatprep.subr.mxu0 0.0
    %1109 = vmatpush1.msra.mxu0 %v1090
    %1110 = vmatprep.subr.mxu0 0.0
    %1111 = vmatpush1.msra.mxu0 %v1091
    %1112 = vmatprep.subr.mxu0 0.0
    %1113 = vmatpush1.msra.mxu0 %v1092
    %1114 = vmatprep.subr.mxu0 0.0
    %1115 = vmatpush1.msra.mxu0 0.0
    %1116 = vmatprep.subr.mxu0 0.0
    %1117 = vmatpush1.msra.mxu0 0.0
    %1118 = vmatprep.subr.mxu0 0.0
    %1119 = vmatpush1.msra.mxu0 0.0
    %1120 = vmatprep.subr.mxu0 0.0
    %1121 = vmatpush1.msra.mxu0 0.0
    %1122 = vmatprep.subr.mxu0 0.0
    %1123 = vmatpush1.msra.mxu0 0.0
    %1124 = vmatprep.subr.mxu0 0.0
    %1125 = vmatpush1.msra.mxu0 0.0
    %1126 = vmatprep.subr.mxu0 0.0
    %1127 = vmatpush1.msra.mxu0 0.0
    %1128 = vmatprep.subr.mxu0 0.0
    %1129 = vmatpush1.msra.mxu0 0.0
    %1130 = vmatprep.subr.mxu0 0.0
    %1131 = vmatpush1.msra.mxu0 0.0
    %1132 = vmatprep.subr.mxu0 0.0
    %1133 = vmatpush1.msra.mxu0 0.0
    %1134 = vmatprep.subr.mxu0 0.0
    %1135 = vmatpush1.msra.mxu0 0.0
    %1136 = vmatprep.subr.mxu0 0.0
    %1137 = vmatpush1.msra.mxu0 0.0
    %1138 = vmatprep.subr.mxu0 0.0
    %1139 = vmatpush1.msra.mxu0 0.0
    %1140 = vmatprep.subr.mxu0 0.0
    %1141 = vmatpush1.msra.mxu0 0.0
    %1142 = vmatprep.subr.mxu0 0.0
    %1143 = vmatpush1.msra.mxu0 0.0
    %1144 = vmatprep.subr.mxu0 0.0
    %1145 = vmatpush1.msra.mxu0 0.0
    %1146 = vmatprep.subr.mxu0 0.0
    %1147 = vmatpush1.msra.mxu0 0.0
    %1148 = vmatprep.subr.mxu0 0.0
    %1149 = vmatpush1.msra.mxu0 0.0
    %1150 = vmatprep.subr.mxu0 0.0
    %1151 = vmatpush1.msra.mxu0 0.0
    %1152 = vmatprep.subr.mxu0 0.0
    %1153 = vmatpush1.msra.mxu0 0.0
    %1154 = vmatprep.subr.mxu0 0.0
    %1155 = vmatpush1.msra.mxu0 0.0
    %1156 = vmatprep.subr.mxu0 0.0
    %1157 = vmatpush1.msra.mxu0 0.0
    %1158 = vmatprep.subr.mxu0 0.0
    %1159 = vmatpush1.msra.mxu0 0.0
    %1160 = vmatprep.subr.mxu0 0.0
    %1161 = vmatpush1.msra.mxu0 0.0
    %1162 = vmatprep.subr.mxu0 0.0
    %1163 = vmatpush1.msra.mxu0 0.0
    %1164 = vmatprep.subr.mxu0 0.0
    %1165 = vmatpush1.msra.mxu0 0.0
    %1166 = vmatprep.subr.mxu0 0.0
    %1167 = vmatpush1.msra.mxu0 0.0
    %1168 = vmatprep.subr.mxu0 0.0
    %1169 = vmatpush1.msra.mxu0 0.0
    %1170 = vmatprep.mubr.f32.mxu0 0.0
    %1171 = vmatmul.mubr.f32.gmra.mrb[0].mxu0 %v1101
    %v1172 = vpop.f32.mrb[0].mxu0
    %v1173 = vadd.f32 %v1098, %v1172
    %v1174 = vpop.f32.mrb[0].mxu0
    %1175 = vmatprep.mubr.f32.mxu0 0.0
    %1176 = vmatmul.mubr.f32.gmra.mrb[0].mxu0 %v1104
    %v1177 = vpop.f32.mrb[0].mxu0
    %v1178 = vadd.f32 %v1098, %v1177
    %v1179 = vpop.f32.mrb[0].mxu0
    %1180 = vdwg.mxu0
    %v1181 = vtanh.pop %v1173
    %v1182 = vtanh.pop %v1178
    %v1183 = vld [vmem:[#allocation12] sm:$0xff]
    %v1184 = vld [vmem:[#allocation12 + $0x8] sm:$0xff]
    %v1185 = vld [vmem:[#allocation12 + $0x10] sm:$0xff]
    %v1186 = vld [vmem:[#allocation12 + $0x18] sm:$0xff]
    %v1187 = vld [vmem:[#allocation12 + $0x20] sm:$0xff]
    %v1188 = vld [vmem:[#allocation12 + $0x28] sm:$0xff]
    %v1189 = vld [vmem:[#allocation12 + $0x30] sm:$0xff]
    %v1190 = vld [vmem:[#allocation12 + $0x38] sm:$0xff]
    %v1191 = vld [vmem:[%s9] sm:$0x1]
    %v1193 = vlaneseq
    %v1194 = vshrl.u32 %v1193, 7
    %v1195 = vsub.s32 0, %v1194
    %v1196 = vrot.slane %v1191, %v1195
    %vm1198 = vcmask 523264
    %v1200 = vsel %vm1198, %v1181, 0
    %v1203 = vsel %vm1198, %v1182, 0
    %1205 = vmatprep.subr.mxu0 0.0
    %1206 = vmatpush1.msra.mxu0 %v1183
    %1207 = vmatprep.subr.mxu0 0.0
    %1208 = vmatpush1.msra.mxu0 %v1184
    %1209 = vmatprep.subr.mxu0 0.0
    %1210 = vmatpush1.msra.mxu0 %v1185
    %1211 = vmatprep.subr.mxu0 0.0
    %1212 = vmatpush1.msra.mxu0 %v1186
    %1213 = vmatprep.subr.mxu0 0.0
    %1214 = vmatpush1.msra.mxu0 %v1187
    %1215 = vmatprep.subr.mxu0 0.0
    %1216 = vmatpush1.msra.mxu0 %v1188
    %1217 = vmatprep.subr.mxu0 0.0
    %1218 = vmatpush1.msra.mxu0 %v1189
    %1219 = vmatprep.subr.mxu0 0.0
    %1220 = vmatpush1.msra.mxu0 %v1190
    %1221 = vmatprep.subr.mxu0 0.0
    %1222 = vmatpush1.msra.mxu0 0.0
    %1223 = vmatprep.subr.mxu0 0.0
    %1224 = vmatpush1.msra.mxu0 0.0
    %1225 = vmatprep.subr.mxu0 0.0
    %1226 = vmatpush1.msra.mxu0 0.0
    %1227 = vmatprep.subr.mxu0 0.0
    %1228 = vmatpush1.msra.mxu0 0.0
    %1229 = vmatprep.subr.mxu0 0.0
    %1230 = vmatpush1.msra.mxu0 0.0
    %1231 = vmatprep.subr.mxu0 0.0
    %1232 = vmatpush1.msra.mxu0 0.0
    %1233 = vmatprep.subr.mxu0 0.0
    %1234 = vmatpush1.msra.mxu0 0.0
    %1235 = vmatprep.subr.mxu0 0.0
    %1236 = vmatpush1.msra.mxu0 0.0
    %1237 = vmatprep.subr.mxu0 0.0
    %1238 = vmatpush1.msra.mxu0 0.0
    %1239 = vmatprep.subr.mxu0 0.0
    %1240 = vmatpush1.msra.mxu0 0.0
    %1241 = vmatprep.subr.mxu0 0.0
    %1242 = vmatpush1.msra.mxu0 0.0
    %1243 = vmatprep.subr.mxu0 0.0
    %1244 = vmatpush1.msra.mxu0 0.0
    %1245 = vmatprep.subr.mxu0 0.0
    %1246 = vmatpush1.msra.mxu0 0.0
    %1247 = vmatprep.subr.mxu0 0.0
    %1248 = vmatpush1.msra.mxu0 0.0
    %1249 = vmatprep.subr.mxu0 0.0
    %1250 = vmatpush1.msra.mxu0 0.0
    %1251 = vmatprep.subr.mxu0 0.0
    %1252 = vmatpush1.msra.mxu0 0.0
    %1253 = vmatprep.subr.mxu0 0.0
    %1254 = vmatpush1.msra.mxu0 0.0
    %1255 = vmatprep.subr.mxu0 0.0
    %1256 = vmatpush1.msra.mxu0 0.0
    %1257 = vmatprep.subr.mxu0 0.0
    %1258 = vmatpush1.msra.mxu0 0.0
    %1259 = vmatprep.subr.mxu0 0.0
    %1260 = vmatpush1.msra.mxu0 0.0
    %1261 = vmatprep.subr.mxu0 0.0
    %1262 = vmatpush1.msra.mxu0 0.0
    %1263 = vmatprep.subr.mxu0 0.0
    %1264 = vmatpush1.msra.mxu0 0.0
    %1265 = vmatprep.subr.mxu0 0.0
    %1266 = vmatpush1.msra.mxu0 0.0
    %1267 = vmatprep.subr.mxu0 0.0
    %1268 = vmatpush1.msra.mxu0 0.0
    %1269 = vmatprep.mubr.f32.mxu0 0.0
    %1270 = vmatmul.mubr.f32.gmra.mrb[0].mxu0 %v1200
    %v1271 = vpop.f32.mrb[0].mxu0
    %v1272 = vadd.f32 %v1196, %v1271
    %v1273 = vpop.f32.mrb[0].mxu0
    %1274 = vmatprep.mubr.f32.mxu0 0.0
    %1275 = vmatmul.mubr.f32.gmra.mrb[0].mxu0 %v1203
    %v1276 = vpop.f32.mrb[0].mxu0
    %v1277 = vadd.f32 %v1196, %v1276
    %v1278 = vpop.f32.mrb[0].mxu0
    %1279 = vdwg.mxu0
    %1282 = vrot.lane.b32.xlu0 %v1272, 124
    %v1283 = vpop.permute.xlu0 %1282
    %1284 = vrot.lane.b32.xlu0 %v1277, 124
    %v1285 = vpop.permute.xlu0 %1284
    %v1288 = vmax.f32 %v1272, %v1283
    %v1289 = vmax.f32 %v1277, %v1285
    %1290 = vrot.lane.b32.xlu0 %v1272, 120
    %v1291 = vpop.permute.xlu0 %1290
    %1292 = vrot.lane.b32.xlu0 %v1277, 120
    %v1293 = vpop.permute.xlu0 %1292
    %v1296 = vmax.f32 %v1288, %v1291
    %v1297 = vmax.f32 %v1289, %v1293
    %1298 = vrot.lane.b32.xlu0 %v1272, 116
    %v1299 = vpop.permute.xlu0 %1298
    %1300 = vrot.lane.b32.xlu0 %v1277, 116
    %v1301 = vpop.permute.xlu0 %1300
    %v1304 = vmax.f32 %v1296, %v1299
    %v1305 = vmax.f32 %v1297, %v1301
    %1306 = vrot.lane.b32.xlu0 %v1272, 112
    %v1307 = vpop.permute.xlu0 %1306
    %1308 = vrot.lane.b32.xlu0 %v1277, 112
    %v1309 = vpop.permute.xlu0 %1308
    %v1312 = vmax.f32 %v1304, %v1307
    %v1313 = vmax.f32 %v1305, %v1309
    %1316 = vrot.lane.b32.xlu0 %v1312, 4
    %v1317 = vpop.permute.xlu0 %1316
    %1318 = vrot.lane.b32.xlu0 %v1313, 4
    %v1319 = vpop.permute.xlu0 %1318
    %1322 = vrot.lane.b32.xlu0 %v1312, 8
    %v1323 = vpop.permute.xlu0 %1322
    %1324 = vrot.lane.b32.xlu0 %v1313, 8
    %v1325 = vpop.permute.xlu0 %1324
    %1328 = vrot.lane.b32.xlu0 %v1312, 12
    %v1329 = vpop.permute.xlu0 %1328
    %1330 = vrot.lane.b32.xlu0 %v1313, 12
    %v1331 = vpop.permute.xlu0 %1330
    %1334 = vrot.lane.b32.xlu0 %v1312, 16
    %v1335 = vpop.permute.xlu0 %1334
    %1336 = vrot.lane.b32.xlu0 %v1313, 16
    %v1337 = vpop.permute.xlu0 %1336
    %vm1340 = vcmask 31744
    %v1341 = vsel %vm1340, %v1312, %v1317
    %v1342 = vsel %vm1340, %v1313, %v1319
    %vm1343 = vcmask 64512
    %v1344 = vsel %vm1343, %v1341, %v1323
    %v1345 = vsel %vm1343, %v1342, %v1325
    %vm1346 = vcmask 97280
    %v1347 = vsel %vm1346, %v1344, %v1329
    %v1348 = vsel %vm1346, %v1345, %v1331
    %v1349 = vsel %vm119, %v1347, %v1335
    %v1350 = vsel %vm119, %v1348, %v1337
    %v1351 = vsub.f32 %v1272, %v1349
    %v1352 = vsub.f32 %v1277, %v1350
    %v1353 = vmul.f32 %v1351, 1.442695
    %v1354 = vpow.pop %v1353
    %v1355 = vmul.f32 %v1352, 1.442695
    %v1356 = vpow.pop %v1355
    %1359 = vrot.lane.b32.xlu0 %v1354, 124
    %v1360 = vpop.permute.xlu0 %1359
    %1361 = vrot.lane.b32.xlu0 %v1356, 124
    %v1362 = vpop.permute.xlu0 %1361
    %v1365 = vadd.f32 %v1354, %v1360
    %v1366 = vadd.f32 %v1356, %v1362
    %1367 = vrot.lane.b32.xlu0 %v1354, 120
    %v1368 = vpop.permute.xlu0 %1367
    %1369 = vrot.lane.b32.xlu0 %v1356, 120
    %v1370 = vpop.permute.xlu0 %1369
    %v1373 = vadd.f32 %v1365, %v1368
    %v1374 = vadd.f32 %v1366, %v1370
    %1375 = vrot.lane.b32.xlu0 %v1354, 116
    %v1376 = vpop.permute.xlu0 %1375
    %1377 = vrot.lane.b32.xlu0 %v1356, 116
    %v1378 = vpop.permute.xlu0 %1377
    %v1381 = vadd.f32 %v1373, %v1376
    %v1382 = vadd.f32 %v1374, %v1378
    %1383 = vrot.lane.b32.xlu0 %v1354, 112
    %v1384 = vpop.permute.xlu0 %1383
    %1385 = vrot.lane.b32.xlu0 %v1356, 112
    %v1386 = vpop.permute.xlu0 %1385
    %v1389 = vadd.f32 %v1381, %v1384
    %v1390 = vadd.f32 %v1382, %v1386
    %1393 = vrot.lane.b32.xlu0 %v1389, 4
    %v1394 = vpop.permute.xlu0 %1393
    %1395 = vrot.lane.b32.xlu0 %v1390, 4
    %v1396 = vpop.permute.xlu0 %1395
    %1399 = vrot.lane.b32.xlu0 %v1389, 8
    %v1400 = vpop.permute.xlu0 %1399
    %1401 = vrot.lane.b32.xlu0 %v1390, 8
    %v1402 = vpop.permute.xlu0 %1401
    %1405 = vrot.lane.b32.xlu0 %v1389, 12
    %v1406 = vpop.permute.xlu0 %1405
    %1407 = vrot.lane.b32.xlu0 %v1390, 12
    %v1408 = vpop.permute.xlu0 %1407
    %1411 = vrot.lane.b32.xlu0 %v1389, 16
    %v1412 = vpop.permute.xlu0 %1411
    %1413 = vrot.lane.b32.xlu0 %v1390, 16
    %v1414 = vpop.permute.xlu0 %1413
    %v1417 = vsel %vm1340, %v1389, %v1394
    %v1418 = vsel %vm1340, %v1390, %v1396
    %v1419 = vsel %vm1343, %v1417, %v1400
    %v1420 = vsel %vm1343, %v1418, %v1402
    %v1421 = vsel %vm1346, %v1419, %v1406
    %v1422 = vsel %vm1346, %v1420, %v1408
    %v1423 = vsel %vm119, %v1421, %v1412
    %v1424 = vsel %vm119, %v1422, %v1414
    %v1425 = vrcp.pop %v1423
    %v1426 = vmul.f32 %v1354, %v1425
    %v1427 = vrcp.pop %v1424
    %v1428 = vmul.f32 %v1356, %v1427
    %v1429 = vmul.f32 %v1272, 1.442695
    %v1430 = vpow.pop %v1429
    %v1431 = vmul.f32 %v1277, 1.442695
    %v1432 = vpow.pop %v1431
    %vm1433 = vcmask 162816
    %v1434 = vsel %vm1433, %v1426, %v1430
    %v1435 = vsel %vm1433, %v1428, %v1432
    %vm1436 = vcmask 326656
    %v1437 = vsel %vm1436, %v1434, %v1272
    %v1438 = vsel %vm1436, %v1435, %v1277
    %vm1439 = vcmask 490496
    %1440 = vst.msk [vmem:[#allocation13] sm:$0xff] %vm1439, %v1437
    %1441 = vst.msk [vmem:[#allocation13 + $0x8] sm:$0xff] %vm1439, %v1438
    // Predicated region
    $region62: #{tpu_custom_call.1} parent=1 // pred_check
      _
    $region63: #{tpu_custom_call.1} parent=1 // pred_check_branch
      %1443 = sbr.rel (0) target = $region65
    $region64: #{tpu_custom_call.1} parent=1 // pred_region
      %s1445 = ssub.s32 256, 256
      %1446 = vsyncadd [#allocation6], %s1445
      %s1447 = sshll.u32 [#allocation13], 4
      %s1448 = int_to_ptr.vmem [resolvable:$true] %s1447
      %1453 = dma.vmem_to_hbm [thread:$0]  %s1448, 256, %s10, [#allocation6], 128, 128, 8
    $region65: #{tpu_custom_call.1} parent=1 // pred_fallthru
      _
    // Predicated region
    $region66: #{tpu_custom_call.1} parent=1 // pred_check
      _
    $region67: #{tpu_custom_call.1} parent=1 // pred_check_branch
      %1455 = sbr.rel (0) target = $region69
    $region68: #{tpu_custom_call.1} parent=1 // pred_region
      %s1457 = ssub.s32 32, 32
      %1458 = vsyncadd [#allocation15], %s1457
      %s1460 = sshll.u32 [#allocation14], 4
      %s1461 = int_to_ptr.vmem [resolvable:$true] %s1460
      %1463 = dma.vmem_to_hbm [thread:$0]  %s1461, 32, %s11, [#allocation15]
    $region69: #{tpu_custom_call.1} parent=1 // pred_fallthru
      _
    // Predicated region
    $region70: #{tpu_custom_call.1} parent=1 // pred_check
      _
    $region71: #{tpu_custom_call.1} parent=1 // pred_check_branch
      %1465 = sbr.rel (0) target = $region73
    $region72: #{tpu_custom_call.1} parent=1 // pred_region
      %s1467 = ssub.s32 32, 32
      %1468 = vsyncadd [#allocation15], %s1467
      %s1470 = sshll.u32 [#allocation16], 4
      %s1471 = int_to_ptr.vmem [resolvable:$true] %s1470
      %1473 = dma.vmem_to_hbm [thread:$0]  %s1471, 32, %s12, [#allocation15]
    $region73: #{tpu_custom_call.1} parent=1 // pred_fallthru
      _
    // Predicated region
    $region74: #{tpu_custom_call.1} parent=1 // pred_check
      _
    $region75: #{tpu_custom_call.1} parent=1 // pred_check_branch
      %1475 = sbr.rel (0) target = $region77
    $region76: #{tpu_custom_call.1} parent=1 // pred_region
      %1476 = dma.done [#allocation6], 256
    $region77: #{tpu_custom_call.1} parent=1 // pred_fallthru
      _
    // Predicated region
    $region78: #{tpu_custom_call.1} parent=1 // pred_check
      _
    $region79: #{tpu_custom_call.1} parent=1 // pred_check_branch
      %1478 = sbr.rel (0) target = $region81
    $region80: #{tpu_custom_call.1} parent=1 // pred_region
      %1479 = dma.done [#allocation15], 32
    $region81: #{tpu_custom_call.1} parent=1 // pred_fallthru
      _
    // Predicated region
    $region82: #{tpu_custom_call.1} parent=1 // pred_check
      _
    $region83: #{tpu_custom_call.1} parent=1 // pred_check_branch
      %1481 = sbr.rel (0) target = $region85
    $region84: #{tpu_custom_call.1} parent=1 // pred_region
      %1482 = dma.done [#allocation15], 32
    $region85: #{tpu_custom_call.1} parent=1 // pred_fallthru
      _
    %1483 = vsyncpa [#allocation5], 1
    %1484 = vsyncpa [#allocation8], 1
    %1485 = vsyncpa [#allocation11], 1
    %1486 = vsyncpa [#allocation6], 1
    %1487 = vsyncpa [#allocation15], 1

</llo_original>
